<compile_context>
chip_gen: v5e
topology: v5e:2x2
jax: 0.10.0
libtpu: 0.0.40
codegen_flags: <defaults>
</compile_context>

<pallas_src>
import math
import functools

import numpy as np
import jax
import jax.numpy as jnp
from jax import lax
from jax.experimental import pallas as pl
from jax.experimental.pallas import tpu as pltpu

_HALF_SQRT_PI = 0.5 * math.sqrt(math.pi)

# Abramowitz & Stegun 7.1.26 erf coefficients
_ERF_P = 0.3275911
_ERF_A = (0.254829592, -0.284496736, 1.421413741, -1.453152027, 1.061405429)


def _erf_parts(u):
    """erf(u) = sign(u) * (1 - poly(|u|) * exp(-u*u)).  Returns (sign, poly) so the
    exp can be fused/shared by the caller (saves one exp per bin)."""
    a1, a2, a3, a4, a5 = _ERF_A
    sign = jnp.where(u >= 0.0, 1.0, -1.0)
    au = jnp.abs(u)
    t = 1.0 / (1.0 + _ERF_P * au)
    poly = t * (a1 + t * (a2 + t * (a3 + t * (a4 + t * a5))))
    return sign, poly


def _dsum(x):
    """Sum over the small static embedding axis (leading, on sublanes) -> (1, TP).
    Unrolled adds instead of a generic reduce (D is tiny, e.g. 4)."""
    acc = x[0:1, :]
    for k in range(1, x.shape[0]):
        acc = acc + x[k:k + 1, :]
    return acc


def _nhpp_nll_kernel(dx0_ref, dv_ref, beta_ref, cnt_ref, a1_ref, a2_ref,
                     out_ref, *, bin_width, delta):
    dxt = dx0_ref[...]            # (D, TP) running position delta at the bin start
    beta_ij = beta_ref[...]       # (1, TP)
    num_bins = dv_ref.shape[0]

    nll = jnp.zeros_like(beta_ij)  # (1, TP) per-pair partial nll

    for b in range(num_bins):      # static unroll; per-bin loads bound live ranges
        dv_b = dv_ref[b]                       # (D, TP)
        cnt_b = cnt_ref[b:b + 1, :]            # (1, TP)
        a1_b = a1_ref[b:b + 1, :]
        a2_b = a2_ref[b:b + 1, :]

        norm_dv_sq = _dsum(dv_b * dv_b)        # (1, TP)
        norm_dx_sq = _dsum(dxt * dxt)
        dxv = _dsum(dxt * dv_b)

        # -- sum of log-intensities over the events that fall into this bin --
        #    log lambda(t_b + tau) = beta - |dx|^2 - 2 (dx.dv) tau - |dv|^2 tau^2
        evt = cnt_b * (beta_ij - norm_dx_sq) - 2.0 * dxv * a1_b - norm_dv_sq * a2_b

        # -- analytic integral of lambda over the bin (erf form) --
        base = jnp.exp(beta_ij - norm_dx_sq)          # shared exp factor (exp #1)
        nsq = jnp.maximum(norm_dv_sq, delta)          # clamp tied to branch threshold
        inv_norm = lax.rsqrt(nsq)                     # EUP rsqrt, no sqrt+divide
        norm_dv = nsq * inv_norm
        r = dxv * inv_norm                            # |r| <= |dx|  (Cauchy-Schwarz)
        u1 = bin_width * norm_dv + r                  # u0 == r

        s0, poly0 = _erf_parts(r)
        s1, poly1 = _erf_parts(u1)
        exp_r2 = jnp.exp(r * r)                       # exp #2
        # exp(r^2) * (erf(u1) - erf(r)); exp(r^2 - r^2) == 1 is folded away, so only
        # one more exp is needed (exp #3) -> 3 transcendental exps per bin.
        erf_term = ((s1 - s0) * exp_r2
                    - s1 * poly1 * jnp.exp(r * r - u1 * u1)
                    + s0 * poly0)
        integ_erf = _HALF_SQRT_PI * inv_norm * base * erf_term
        integ_const = bin_width * base                # zero-velocity limit
        integ = jnp.where(norm_dv_sq > delta, integ_erf, integ_const)

        nll = nll + (integ - evt)
        dxt = dxt + bin_width * dv_b

    out_ref[...] = nll     # lane-dense per-pair partials; reduced in the JAX wrapper


def nhpp_nll_pallas(x0, v, beta, pairs, events_count, alpha1, alpha2,
                    last_time, tile_pairs=512):
    """Scalar NHPP negative log-likelihood for the given batch pairs."""
    nodes_num, dim = x0.shape
    bins_num = v.shape[0]
    bin_width = float(last_time) / float(bins_num)

    num_pairs = pairs.shape[1]
    # pair axis lives on the lane axis -> tile must be a multiple of 128
    tp = min(int(tile_pairs), ((num_pairs + 127) // 128) * 128)
    tp = max(128, ((tp + 127) // 128) * 128)
    p_pad = ((num_pairs + tp - 1) // tp) * tp
    pad = p_pad - num_pairs

    pairs_p = jnp.concatenate(
        [pairs, jnp.zeros((2, pad), dtype=pairs.dtype)], axis=1)
    pi, pj = pairs_p[0], pairs_p[1]

    # Gather + differences done once in XLA, laid out pair-on-lanes (halves the
    # velocity bytes the kernel has to stream from HBM).
    dx0 = (x0[pi] - x0[pj]).astype(jnp.float32).T                       # (D, P_pad)
    dv = jnp.transpose(v[:, pi, :] - v[:, pj, :], (0, 2, 1)).astype(jnp.float32)  # (B, D, P_pad)
    beta_ij = (beta[pi] + beta[pj]).astype(jnp.float32).reshape(1, p_pad)

    def pad_pb(a):  # (P, B) -> (B, P_pad)
        a = a.astype(jnp.float32)
        a = jnp.concatenate([a, jnp.zeros((pad, a.shape[1]), jnp.float32)], axis=0)
        return a.T

    cnt = pad_pb(events_count)
    a1 = pad_pb(alpha1)
    a2 = pad_pb(alpha2)

    grid = (p_pad // tp,)
    kernel = functools.partial(_nhpp_nll_kernel, bin_width=bin_width, delta=1e-6)

    out = pl.pallas_call(
        kernel,
        out_shape=jax.ShapeDtypeStruct((1, p_pad), jnp.float32),
        grid=grid,
        in_specs=[
            pl.BlockSpec((dim, tp), lambda i: (0, i)),                 # dx0
            pl.BlockSpec((bins_num, dim, tp), lambda i: (0, 0, i)),    # dv
            pl.BlockSpec((1, tp), lambda i: (0, i)),                   # beta_i + beta_j
            pl.BlockSpec((bins_num, tp), lambda i: (0, i)),            # counts
            pl.BlockSpec((bins_num, tp), lambda i: (0, i)),            # alpha1
            pl.BlockSpec((bins_num, tp), lambda i: (0, i)),            # alpha2
        ],
        out_specs=pl.BlockSpec((1, tp), lambda i: (0, i)),             # per-pair nll
        compiler_params=pltpu.CompilerParams(
            dimension_semantics=("parallel",),
            vmem_limit_bytes=48 * 1024 * 1024),
    )(dx0, dv, beta_ij, cnt, a1, a2)

    # padded pairs are simply excluded from the reduction
    return jnp.sum(out[0, :num_pairs])


def learning_model_forward(params, pairs, events_count, alpha1, alpha2,
                           last_time, prior_lambda=1.0):
    """Mirror of LearningModel.forward (approach='nhpp', no masked_pairs)."""
    nll = nhpp_nll_pallas(params["x0"], params["v"], params["beta"],
                          pairs, events_count, alpha1, alpha2, last_time)
    # TODO(synk): get_neg_log_prior (matrix-normal GP prior, needs the B (x) C kernel
    #             Cholesky/solve) is defined in BaseModel which was not provided.
    prior = jnp.float32(0.0)
    total = nll + prior
    return total, nll


# ----------------------------------------------------------------------------------
# deterministic setup (mirrors LearningModel.__init__ parameter shapes / init)
# ----------------------------------------------------------------------------------
def init_params(key, nodes_num, bins_num, dim, prior_k):
    k0, k1, k2, k3, k4 = jax.random.split(key, 5)
    x0 = 2.0 * jax.random.uniform(k0, (nodes_num, dim), jnp.float32) - 1.0
    v = jnp.zeros((bins_num, nodes_num, dim), jnp.float32)
    beta = 2.0 * jax.random.uniform(k1, (nodes_num,), jnp.float32) - 1.0
    prior_sigma = (2.0 / bins_num) * jax.random.uniform(k2, (1,), jnp.float32) + 1.0 / bins_num
    prior_B_ls = (1.0 - 2.0 / bins_num) * jax.random.uniform(k3, (1,), jnp.float32) + 1.0 / bins_num
    prior_C_Q = jax.random.uniform(k4, (nodes_num, prior_k), jnp.float32)
    prior_B_x0_c = jnp.ones((1, 1), jnp.float32)
    return {"x0": x0, "v": v, "beta": beta, "prior_sigma": prior_sigma,
            "prior_B_ls": prior_B_ls, "prior_C_Q": prior_C_Q, "prior_B_x0_c": prior_B_x0_c}


def compute_coefficients_np(pairs_np, events_per_pair, bins_num, bin_width):
    """Glue replica of LearningModel.compute_coefficients for the batch pairs."""
    num_pairs = pairs_np.shape[1]
    cnt = np.zeros((num_pairs, bins_num), dtype=np.float32)
    a1 = np.zeros((num_pairs, bins_num), dtype=np.float32)
    a2 = np.zeros((num_pairs, bins_num), dtype=np.float32)
    for p in range(num_pairs):
        ts = np.asarray(events_per_pair[p], dtype=np.float32)
        if ts.size == 0:
            continue
        b = np.floor(ts / bin_width).astype(np.int32)
        b[b == bins_num] = bins_num - 1
        rem = np.remainder(ts, bin_width)
        np.add.at(cnt[p], b, 1.0)
        np.add.at(a1[p], b, rem)
        np.add.at(a2[p], b, rem ** 2)
    return cnt, a1, a2


if __name__ == "__main__":
    nodes_num, bins_num, dim, prior_k = 16, 8, 4, 10
    last_time = 1.0
    bin_width = last_time / bins_num

    key = jax.random.PRNGKey(0)
    key, pkey, ekey = jax.random.split(key, 3)
    params = init_params(pkey, nodes_num, bins_num, dim, prior_k)
    # give velocities a small nonzero value so both integral branches are exercised
    params["v"] = 0.1 * jax.random.normal(key, params["v"].shape, jnp.float32)

    # batch of nodes -> all node pairs (torch.combinations equivalent)
    batch_nodes = np.arange(8, dtype=np.int32)
    pairs_np = np.array([[i, j] for a, i in enumerate(batch_nodes)
                         for j in batch_nodes[a + 1:]], dtype=np.int32).T   # (2, 28)

    # deterministic synthetic event times in [0, last_time) for every pair
    ev_times = np.asarray(jax.random.uniform(ekey, (pairs_np.shape[1], 5),
                                             minval=0.0, maxval=last_time))
    events_per_pair = [ev_times[p] for p in range(pairs_np.shape[1])]

    cnt, a1, a2 = compute_coefficients_np(pairs_np, events_per_pair, bins_num, bin_width)

    pairs = jnp.asarray(pairs_np)
    total, nll = learning_model_forward(
        params, pairs, jnp.asarray(cnt), jnp.asarray(a1), jnp.asarray(a2),
        last_time=last_time, prior_lambda=1.0)

    total = jax.block_until_ready(total)
    nll = jax.block_until_ready(nll)
    assert np.isfinite(float(total)) and np.isfinite(float(nll))
    print("KERNEL_OK")
</pallas_src>

<mosaic_0001>
module attributes {stable_mosaic.version = 11 : i64} {
  func.func @_nhpp_nll_kernel(%arg0: i32, %arg1: memref<4x128xf32, #tpu.memory_space<vmem>>, %arg2: memref<8x4x128xf32, #tpu.memory_space<vmem>>, %arg3: memref<1x128xf32, #tpu.memory_space<vmem>>, %arg4: memref<8x128xf32, #tpu.memory_space<vmem>>, %arg5: memref<8x128xf32, #tpu.memory_space<vmem>>, %arg6: memref<8x128xf32, #tpu.memory_space<vmem>>, %arg7: memref<1x128xf32, #tpu.memory_space<vmem>>) attributes {dimension_semantics = [#tpu.dimension_semantics<parallel>], iteration_bounds = array<i64: 1>, scalar_prefetch = 0 : i64, scratch_operands = 0 : i64, tpu.core_type = #tpu.core_type<tc>, window_params = [{transform_indices = @transform_0, window_bounds = array<i64: 4, 128>}, {transform_indices = @transform_1, window_bounds = array<i64: 8, 4, 128>}, {transform_indices = @transform_2, window_bounds = array<i64: 1, 128>}, {transform_indices = @transform_3, window_bounds = array<i64: 8, 128>}, {transform_indices = @transform_4, window_bounds = array<i64: 8, 128>}, {transform_indices = @transform_5, window_bounds = array<i64: 8, 128>}, {transform_indices = @transform_6, window_bounds = array<i64: 1, 128>}]} {
    %c0 = arith.constant 0 : index
    %c0_0 = arith.constant 0 : index
    %0 = vector.load %arg1[%c0, %c0_0] : memref<4x128xf32, #tpu.memory_space<vmem>>, vector<4x128xf32>
    %c0_1 = arith.constant 0 : index
    %c0_2 = arith.constant 0 : index
    %1 = vector.load %arg3[%c0_1, %c0_2] : memref<1x128xf32, #tpu.memory_space<vmem>>, vector<1x128xf32>
    %cst = arith.constant 0.000000e+00 : f32
    %2 = vector.broadcast %cst : f32 to vector<1x128xf32>
    %c0_3 = arith.constant 0 : index
    %c0_4 = arith.constant 0 : index
    %c0_5 = arith.constant 0 : index
    %3 = vector.load %arg2[%c0_3, %c0_4, %c0_5] : memref<8x4x128xf32, #tpu.memory_space<vmem>>, vector<1x4x128xf32>
    %4 = vector.shape_cast %3 : vector<1x4x128xf32> to vector<4x128xf32>
    %c0_6 = arith.constant 0 : index
    %c0_7 = arith.constant 0 : index
    %5 = vector.load %arg4[%c0_6, %c0_7] : memref<8x128xf32, #tpu.memory_space<vmem>>, vector<1x128xf32>
    %c0_8 = arith.constant 0 : index
    %c0_9 = arith.constant 0 : index
    %6 = vector.load %arg5[%c0_8, %c0_9] : memref<8x128xf32, #tpu.memory_space<vmem>>, vector<1x128xf32>
    %c0_10 = arith.constant 0 : index
    %c0_11 = arith.constant 0 : index
    %7 = vector.load %arg6[%c0_10, %c0_11] : memref<8x128xf32, #tpu.memory_space<vmem>>, vector<1x128xf32>
    %8 = arith.mulf %4, %4 : vector<4x128xf32>
    %9 = vector.extract_strided_slice %8 {offsets = [0, 0], sizes = [1, 128], strides = [1, 1]} : vector<4x128xf32> to vector<1x128xf32>
    %10 = vector.extract_strided_slice %8 {offsets = [1, 0], sizes = [1, 128], strides = [1, 1]} : vector<4x128xf32> to vector<1x128xf32>
    %11 = arith.addf %9, %10 : vector<1x128xf32>
    %12 = vector.extract_strided_slice %8 {offsets = [2, 0], sizes = [1, 128], strides = [1, 1]} : vector<4x128xf32> to vector<1x128xf32>
    %13 = arith.addf %11, %12 : vector<1x128xf32>
    %14 = vector.extract_strided_slice %8 {offsets = [3, 0], sizes = [1, 128], strides = [1, 1]} : vector<4x128xf32> to vector<1x128xf32>
    %15 = arith.addf %13, %14 : vector<1x128xf32>
    %16 = arith.mulf %0, %0 : vector<4x128xf32>
    %17 = vector.extract_strided_slice %16 {offsets = [0, 0], sizes = [1, 128], strides = [1, 1]} : vector<4x128xf32> to vector<1x128xf32>
    %18 = vector.extract_strided_slice %16 {offsets = [1, 0], sizes = [1, 128], strides = [1, 1]} : vector<4x128xf32> to vector<1x128xf32>
    %19 = arith.addf %17, %18 : vector<1x128xf32>
    %20 = vector.extract_strided_slice %16 {offsets = [2, 0], sizes = [1, 128], strides = [1, 1]} : vector<4x128xf32> to vector<1x128xf32>
    %21 = arith.addf %19, %20 : vector<1x128xf32>
    %22 = vector.extract_strided_slice %16 {offsets = [3, 0], sizes = [1, 128], strides = [1, 1]} : vector<4x128xf32> to vector<1x128xf32>
    %23 = arith.addf %21, %22 : vector<1x128xf32>
    %24 = arith.mulf %0, %4 : vector<4x128xf32>
    %25 = vector.extract_strided_slice %24 {offsets = [0, 0], sizes = [1, 128], strides = [1, 1]} : vector<4x128xf32> to vector<1x128xf32>
    %26 = vector.extract_strided_slice %24 {offsets = [1, 0], sizes = [1, 128], strides = [1, 1]} : vector<4x128xf32> to vector<1x128xf32>
    %27 = arith.addf %25, %26 : vector<1x128xf32>
    %28 = vector.extract_strided_slice %24 {offsets = [2, 0], sizes = [1, 128], strides = [1, 1]} : vector<4x128xf32> to vector<1x128xf32>
    %29 = arith.addf %27, %28 : vector<1x128xf32>
    %30 = vector.extract_strided_slice %24 {offsets = [3, 0], sizes = [1, 128], strides = [1, 1]} : vector<4x128xf32> to vector<1x128xf32>
    %31 = arith.addf %29, %30 : vector<1x128xf32>
    %32 = arith.subf %1, %23 : vector<1x128xf32>
    %33 = arith.mulf %5, %32 : vector<1x128xf32>
    %cst_12 = arith.constant 2.000000e+00 : f32
    %34 = vector.broadcast %cst_12 : f32 to vector<1x128xf32>
    %35 = arith.mulf %34, %31 : vector<1x128xf32>
    %36 = arith.mulf %35, %6 : vector<1x128xf32>
    %37 = arith.subf %33, %36 : vector<1x128xf32>
    %38 = arith.mulf %15, %7 : vector<1x128xf32>
    %39 = arith.subf %37, %38 : vector<1x128xf32>
    %40 = arith.subf %1, %23 : vector<1x128xf32>
    %41 = math.exp %40 : vector<1x128xf32>
    %cst_13 = arith.constant 9.99999997E-7 : f32
    %42 = vector.broadcast %cst_13 : f32 to vector<1x128xf32>
    %43 = arith.maximumf %15, %42 : vector<1x128xf32>
    %44 = math.rsqrt %43 : vector<1x128xf32>
    %45 = arith.mulf %43, %44 : vector<1x128xf32>
    %46 = arith.mulf %31, %44 : vector<1x128xf32>
    %cst_14 = arith.constant 1.250000e-01 : f32
    %47 = vector.broadcast %cst_14 : f32 to vector<1x128xf32>
    %48 = arith.mulf %47, %45 : vector<1x128xf32>
    %49 = arith.addf %48, %46 : vector<1x128xf32>
    %cst_15 = arith.constant 0.000000e+00 : f32
    %50 = vector.broadcast %cst_15 : f32 to vector<1x128xf32>
    %51 = arith.cmpf oge, %46, %50 : vector<1x128xf32>
    %cst_16 = arith.constant 1.000000e+00 : f32
    %cst_17 = arith.constant -1.000000e+00 : f32
    %52 = vector.broadcast %cst_16 : f32 to vector<1x128xf32>
    %53 = vector.broadcast %cst_17 : f32 to vector<1x128xf32>
    %54 = arith.select %51, %52, %53 : vector<1x128xi1>, vector<1x128xf32>
    %55 = math.absf %46 : vector<1x128xf32>
    %cst_18 = arith.constant 0.327591091 : f32
    %56 = vector.broadcast %cst_18 : f32 to vector<1x128xf32>
    %57 = arith.mulf %56, %55 : vector<1x128xf32>
    %cst_19 = arith.constant 1.000000e+00 : f32
    %58 = vector.broadcast %cst_19 : f32 to vector<1x128xf32>
    %59 = arith.addf %58, %57 : vector<1x128xf32>
    %cst_20 = arith.constant 1.000000e+00 : f32
    %60 = vector.broadcast %cst_20 : f32 to vector<1x128xf32>
    %61 = arith.divf %60, %59 : vector<1x128xf32>
    %cst_21 = arith.constant 1.06140542 : f32
    %62 = vector.broadcast %cst_21 : f32 to vector<1x128xf32>
    %63 = arith.mulf %61, %62 : vector<1x128xf32>
    %cst_22 = arith.constant -1.45315206 : f32
    %64 = vector.broadcast %cst_22 : f32 to vector<1x128xf32>
    %65 = arith.addf %64, %63 : vector<1x128xf32>
    %66 = arith.mulf %61, %65 : vector<1x128xf32>
    %cst_23 = arith.constant 1.42141378 : f32
    %67 = vector.broadcast %cst_23 : f32 to vector<1x128xf32>
    %68 = arith.addf %67, %66 : vector<1x128xf32>
    %69 = arith.mulf %61, %68 : vector<1x128xf32>
    %cst_24 = arith.constant -0.284496725 : f32
    %70 = vector.broadcast %cst_24 : f32 to vector<1x128xf32>
    %71 = arith.addf %70, %69 : vector<1x128xf32>
    %72 = arith.mulf %61, %71 : vector<1x128xf32>
    %cst_25 = arith.constant 0.254829586 : f32
    %73 = vector.broadcast %cst_25 : f32 to vector<1x128xf32>
    %74 = arith.addf %73, %72 : vector<1x128xf32>
    %75 = arith.mulf %61, %74 : vector<1x128xf32>
    %cst_26 = arith.constant 0.000000e+00 : f32
    %76 = vector.broadcast %cst_26 : f32 to vector<1x128xf32>
    %77 = arith.cmpf oge, %49, %76 : vector<1x128xf32>
    %cst_27 = arith.constant 1.000000e+00 : f32
    %cst_28 = arith.constant -1.000000e+00 : f32
    %78 = vector.broadcast %cst_27 : f32 to vector<1x128xf32>
    %79 = vector.broadcast %cst_28 : f32 to vector<1x128xf32>
    %80 = arith.select %77, %78, %79 : vector<1x128xi1>, vector<1x128xf32>
    %81 = math.absf %49 : vector<1x128xf32>
    %cst_29 = arith.constant 0.327591091 : f32
    %82 = vector.broadcast %cst_29 : f32 to vector<1x128xf32>
    %83 = arith.mulf %82, %81 : vector<1x128xf32>
    %cst_30 = arith.constant 1.000000e+00 : f32
    %84 = vector.broadcast %cst_30 : f32 to vector<1x128xf32>
    %85 = arith.addf %84, %83 : vector<1x128xf32>
    %cst_31 = arith.constant 1.000000e+00 : f32
    %86 = vector.broadcast %cst_31 : f32 to vector<1x128xf32>
    %87 = arith.divf %86, %85 : vector<1x128xf32>
    %cst_32 = arith.constant 1.06140542 : f32
    %88 = vector.broadcast %cst_32 : f32 to vector<1x128xf32>
    %89 = arith.mulf %87, %88 : vector<1x128xf32>
    %cst_33 = arith.constant -1.45315206 : f32
    %90 = vector.broadcast %cst_33 : f32 to vector<1x128xf32>
    %91 = arith.addf %90, %89 : vector<1x128xf32>
    %92 = arith.mulf %87, %91 : vector<1x128xf32>
    %cst_34 = arith.constant 1.42141378 : f32
    %93 = vector.broadcast %cst_34 : f32 to vector<1x128xf32>
    %94 = arith.addf %93, %92 : vector<1x128xf32>
    %95 = arith.mulf %87, %94 : vector<1x128xf32>
    %cst_35 = arith.constant -0.284496725 : f32
    %96 = vector.broadcast %cst_35 : f32 to vector<1x128xf32>
    %97 = arith.addf %96, %95 : vector<1x128xf32>
    %98 = arith.mulf %87, %97 : vector<1x128xf32>
    %cst_36 = arith.constant 0.254829586 : f32
    %99 = vector.broadcast %cst_36 : f32 to vector<1x128xf32>
    %100 = arith.addf %99, %98 : vector<1x128xf32>
    %101 = arith.mulf %87, %100 : vector<1x128xf32>
    %102 = arith.mulf %46, %46 : vector<1x128xf32>
    %103 = math.exp %102 : vector<1x128xf32>
    %104 = arith.subf %80, %54 : vector<1x128xf32>
    %105 = arith.mulf %104, %103 : vector<1x128xf32>
    %106 = arith.mulf %80, %101 : vector<1x128xf32>
    %107 = arith.mulf %46, %46 : vector<1x128xf32>
    %108 = arith.mulf %49, %49 : vector<1x128xf32>
    %109 = arith.subf %107, %108 : vector<1x128xf32>
    %110 = math.exp %109 : vector<1x128xf32>
    %111 = arith.mulf %106, %110 : vector<1x128xf32>
    %112 = arith.subf %105, %111 : vector<1x128xf32>
    %113 = arith.mulf %54, %75 : vector<1x128xf32>
    %114 = arith.addf %112, %113 : vector<1x128xf32>
    %cst_37 = arith.constant 0.886226952 : f32
    %115 = vector.broadcast %cst_37 : f32 to vector<1x128xf32>
    %116 = arith.mulf %115, %44 : vector<1x128xf32>
    %117 = arith.mulf %116, %41 : vector<1x128xf32>
    %118 = arith.mulf %117, %114 : vector<1x128xf32>
    %cst_38 = arith.constant 1.250000e-01 : f32
    %119 = vector.broadcast %cst_38 : f32 to vector<1x128xf32>
    %120 = arith.mulf %119, %41 : vector<1x128xf32>
    %cst_39 = arith.constant 9.99999997E-7 : f32
    %121 = vector.broadcast %cst_39 : f32 to vector<1x128xf32>
    %122 = arith.cmpf ogt, %15, %121 : vector<1x128xf32>
    %123 = arith.select %122, %118, %120 : vector<1x128xi1>, vector<1x128xf32>
    %124 = arith.subf %123, %39 : vector<1x128xf32>
    %125 = arith.addf %2, %124 : vector<1x128xf32>
    %cst_40 = arith.constant 1.250000e-01 : f32
    %126 = vector.broadcast %cst_40 : f32 to vector<4x128xf32>
    %127 = arith.mulf %126, %4 : vector<4x128xf32>
    %128 = arith.addf %0, %127 : vector<4x128xf32>
    %c1 = arith.constant 1 : index
    %c0_41 = arith.constant 0 : index
    %c0_42 = arith.constant 0 : index
    %129 = vector.load %arg2[%c1, %c0_41, %c0_42] : memref<8x4x128xf32, #tpu.memory_space<vmem>>, vector<1x4x128xf32>
    %130 = vector.shape_cast %129 : vector<1x4x128xf32> to vector<4x128xf32>
    %c1_43 = arith.constant 1 : index
    %c0_44 = arith.constant 0 : index
    %131 = vector.load %arg4[%c1_43, %c0_44] : memref<8x128xf32, #tpu.memory_space<vmem>>, vector<1x128xf32>
    %c1_45 = arith.constant 1 : index
    %c0_46 = arith.constant 0 : index
    %132 = vector.load %arg5[%c1_45, %c0_46] : memref<8x128xf32, #tpu.memory_space<vmem>>, vector<1x128xf32>
    %c1_47 = arith.constant 1 : index
    %c0_48 = arith.constant 0 : index
    %133 = vector.load %arg6[%c1_47, %c0_48] : memref<8x128xf32, #tpu.memory_space<vmem>>, vector<1x128xf32>
    %134 = arith.mulf %130, %130 : vector<4x128xf32>
    %135 = vector.extract_strided_slice %134 {offsets = [0, 0], sizes = [1, 128], strides = [1, 1]} : vector<4x128xf32> to vector<1x128xf32>
    %136 = vector.extract_strided_slice %134 {offsets = [1, 0], sizes = [1, 128], strides = [1, 1]} : vector<4x128xf32> to vector<1x128xf32>
    %137 = arith.addf %135, %136 : vector<1x128xf32>
    %138 = vector.extract_strided_slice %134 {offsets = [2, 0], sizes = [1, 128], strides = [1, 1]} : vector<4x128xf32> to vector<1x128xf32>
    %139 = arith.addf %137, %138 : vector<1x128xf32>
    %140 = vector.extract_strided_slice %134 {offsets = [3, 0], sizes = [1, 128], strides = [1, 1]} : vector<4x128xf32> to vector<1x128xf32>
    %141 = arith.addf %139, %140 : vector<1x128xf32>
    %142 = arith.mulf %128, %128 : vector<4x128xf32>
    %143 = vector.extract_strided_slice %142 {offsets = [0, 0], sizes = [1, 128], strides = [1, 1]} : vector<4x128xf32> to vector<1x128xf32>
    %144 = vector.extract_strided_slice %142 {offsets = [1, 0], sizes = [1, 128], strides = [1, 1]} : vector<4x128xf32> to vector<1x128xf32>
    %145 = arith.addf %143, %144 : vector<1x128xf32>
    %146 = vector.extract_strided_slice %142 {offsets = [2, 0], sizes = [1, 128], strides = [1, 1]} : vector<4x128xf32> to vector<1x128xf32>
    %147 = arith.addf %145, %146 : vector<1x128xf32>
    %148 = vector.extract_strided_slice %142 {offsets = [3, 0], sizes = [1, 128], strides = [1, 1]} : vector<4x128xf32> to vector<1x128xf32>
    %149 = arith.addf %147, %148 : vector<1x128xf32>
    %150 = arith.mulf %128, %130 : vector<4x128xf32>
    %151 = vector.extract_strided_slice %150 {offsets = [0, 0], sizes = [1, 128], strides = [1, 1]} : vector<4x128xf32> to vector<1x128xf32>
    %152 = vector.extract_strided_slice %150 {offsets = [1, 0], sizes = [1, 128], strides = [1, 1]} : vector<4x128xf32> to vector<1x128xf32>
    %153 = arith.addf %151, %152 : vector<1x128xf32>
    %154 = vector.extract_strided_slice %150 {offsets = [2, 0], sizes = [1, 128], strides = [1, 1]} : vector<4x128xf32> to vector<1x128xf32>
    %155 = arith.addf %153, %154 : vector<1x128xf32>
    %156 = vector.extract_strided_slice %150 {offsets = [3, 0], sizes = [1, 128], strides = [1, 1]} : vector<4x128xf32> to vector<1x128xf32>
    %157 = arith.addf %155, %156 : vector<1x128xf32>
    %158 = arith.subf %1, %149 : vector<1x128xf32>
    %159 = arith.mulf %131, %158 : vector<1x128xf32>
    %cst_49 = arith.constant 2.000000e+00 : f32
    %160 = vector.broadcast %cst_49 : f32 to vector<1x128xf32>
    %161 = arith.mulf %160, %157 : vector<1x128xf32>
    %162 = arith.mulf %161, %132 : vector<1x128xf32>
    %163 = arith.subf %159, %162 : vector<1x128xf32>
    %164 = arith.mulf %141, %133 : vector<1x128xf32>
    %165 = arith.subf %163, %164 : vector<1x128xf32>
    %166 = arith.subf %1, %149 : vector<1x128xf32>
    %167 = math.exp %166 : vector<1x128xf32>
    %cst_50 = arith.constant 9.99999997E-7 : f32
    %168 = vector.broadcast %cst_50 : f32 to vector<1x128xf32>
    %169 = arith.maximumf %141, %168 : vector<1x128xf32>
    %170 = math.rsqrt %169 : vector<1x128xf32>
    %171 = arith.mulf %169, %170 : vector<1x128xf32>
    %172 = arith.mulf %157, %170 : vector<1x128xf32>
    %cst_51 = arith.constant 1.250000e-01 : f32
    %173 = vector.broadcast %cst_51 : f32 to vector<1x128xf32>
    %174 = arith.mulf %173, %171 : vector<1x128xf32>
    %175 = arith.addf %174, %172 : vector<1x128xf32>
    %cst_52 = arith.constant 0.000000e+00 : f32
    %176 = vector.broadcast %cst_52 : f32 to vector<1x128xf32>
    %177 = arith.cmpf oge, %172, %176 : vector<1x128xf32>
    %cst_53 = arith.constant 1.000000e+00 : f32
    %cst_54 = arith.constant -1.000000e+00 : f32
    %178 = vector.broadcast %cst_53 : f32 to vector<1x128xf32>
    %179 = vector.broadcast %cst_54 : f32 to vector<1x128xf32>
    %180 = arith.select %177, %178, %179 : vector<1x128xi1>, vector<1x128xf32>
    %181 = math.absf %172 : vector<1x128xf32>
    %cst_55 = arith.constant 0.327591091 : f32
    %182 = vector.broadcast %cst_55 : f32 to vector<1x128xf32>
    %183 = arith.mulf %182, %181 : vector<1x128xf32>
    %cst_56 = arith.constant 1.000000e+00 : f32
    %184 = vector.broadcast %cst_56 : f32 to vector<1x128xf32>
    %185 = arith.addf %184, %183 : vector<1x128xf32>
    %cst_57 = arith.constant 1.000000e+00 : f32
    %186 = vector.broadcast %cst_57 : f32 to vector<1x128xf32>
    %187 = arith.divf %186, %185 : vector<1x128xf32>
    %cst_58 = arith.constant 1.06140542 : f32
    %188 = vector.broadcast %cst_58 : f32 to vector<1x128xf32>
    %189 = arith.mulf %187, %188 : vector<1x128xf32>
    %cst_59 = arith.constant -1.45315206 : f32
    %190 = vector.broadcast %cst_59 : f32 to vector<1x128xf32>
    %191 = arith.addf %190, %189 : vector<1x128xf32>
    %192 = arith.mulf %187, %191 : vector<1x128xf32>
    %cst_60 = arith.constant 1.42141378 : f32
    %193 = vector.broadcast %cst_60 : f32 to vector<1x128xf32>
    %194 = arith.addf %193, %192 : vector<1x128xf32>
    %195 = arith.mulf %187, %194 : vector<1x128xf32>
    %cst_61 = arith.constant -0.284496725 : f32
    %196 = vector.broadcast %cst_61 : f32 to vector<1x128xf32>
    %197 = arith.addf %196, %195 : vector<1x128xf32>
    %198 = arith.mulf %187, %197 : vector<1x128xf32>
    %cst_62 = arith.constant 0.254829586 : f32
    %199 = vector.broadcast %cst_62 : f32 to vector<1x128xf32>
    %200 = arith.addf %199, %198 : vector<1x128xf32>
    %201 = arith.mulf %187, %200 : vector<1x128xf32>
    %cst_63 = arith.constant 0.000000e+00 : f32
    %202 = vector.broadcast %cst_63 : f32 to vector<1x128xf32>
    %203 = arith.cmpf oge, %175, %202 : vector<1x128xf32>
    %cst_64 = arith.constant 1.000000e+00 : f32
    %cst_65 = arith.constant -1.000000e+00 : f32
    %204 = vector.broadcast %cst_64 : f32 to vector<1x128xf32>
    %205 = vector.broadcast %cst_65 : f32 to vector<1x128xf32>
    %206 = arith.select %203, %204, %205 : vector<1x128xi1>, vector<1x128xf32>
    %207 = math.absf %175 : vector<1x128xf32>
    %cst_66 = arith.constant 0.327591091 : f32
    %208 = vector.broadcast %cst_66 : f32 to vector<1x128xf32>
    %209 = arith.mulf %208, %207 : vector<1x128xf32>
    %cst_67 = arith.constant 1.000000e+00 : f32
    %210 = vector.broadcast %cst_67 : f32 to vector<1x128xf32>
    %211 = arith.addf %210, %209 : vector<1x128xf32>
    %cst_68 = arith.constant 1.000000e+00 : f32
    %212 = vector.broadcast %cst_68 : f32 to vector<1x128xf32>
    %213 = arith.divf %212, %211 : vector<1x128xf32>
    %cst_69 = arith.constant 1.06140542 : f32
    %214 = vector.broadcast %cst_69 : f32 to vector<1x128xf32>
    %215 = arith.mulf %213, %214 : vector<1x128xf32>
    %cst_70 = arith.constant -1.45315206 : f32
    %216 = vector.broadcast %cst_70 : f32 to vector<1x128xf32>
    %217 = arith.addf %216, %215 : vector<1x128xf32>
    %218 = arith.mulf %213, %217 : vector<1x128xf32>
    %cst_71 = arith.constant 1.42141378 : f32
    %219 = vector.broadcast %cst_71 : f32 to vector<1x128xf32>
    %220 = arith.addf %219, %218 : vector<1x128xf32>
    %221 = arith.mulf %213, %220 : vector<1x128xf32>
    %cst_72 = arith.constant -0.284496725 : f32
    %222 = vector.broadcast %cst_72 : f32 to vector<1x128xf32>
    %223 = arith.addf %222, %221 : vector<1x128xf32>
    %224 = arith.mulf %213, %223 : vector<1x128xf32>
    %cst_73 = arith.constant 0.254829586 : f32
    %225 = vector.broadcast %cst_73 : f32 to vector<1x128xf32>
    %226 = arith.addf %225, %224 : vector<1x128xf32>
    %227 = arith.mulf %213, %226 : vector<1x128xf32>
    %228 = arith.mulf %172, %172 : vector<1x128xf32>
    %229 = math.exp %228 : vector<1x128xf32>
    %230 = arith.subf %206, %180 : vector<1x128xf32>
    %231 = arith.mulf %230, %229 : vector<1x128xf32>
    %232 = arith.mulf %206, %227 : vector<1x128xf32>
    %233 = arith.mulf %172, %172 : vector<1x128xf32>
    %234 = arith.mulf %175, %175 : vector<1x128xf32>
    %235 = arith.subf %233, %234 : vector<1x128xf32>
    %236 = math.exp %235 : vector<1x128xf32>
    %237 = arith.mulf %232, %236 : vector<1x128xf32>
    %238 = arith.subf %231, %237 : vector<1x128xf32>
    %239 = arith.mulf %180, %201 : vector<1x128xf32>
    %240 = arith.addf %238, %239 : vector<1x128xf32>
    %cst_74 = arith.constant 0.886226952 : f32
    %241 = vector.broadcast %cst_74 : f32 to vector<1x128xf32>
    %242 = arith.mulf %241, %170 : vector<1x128xf32>
    %243 = arith.mulf %242, %167 : vector<1x128xf32>
    %244 = arith.mulf %243, %240 : vector<1x128xf32>
    %cst_75 = arith.constant 1.250000e-01 : f32
    %245 = vector.broadcast %cst_75 : f32 to vector<1x128xf32>
    %246 = arith.mulf %245, %167 : vector<1x128xf32>
    %cst_76 = arith.constant 9.99999997E-7 : f32
    %247 = vector.broadcast %cst_76 : f32 to vector<1x128xf32>
    %248 = arith.cmpf ogt, %141, %247 : vector<1x128xf32>
    %249 = arith.select %248, %244, %246 : vector<1x128xi1>, vector<1x128xf32>
    %250 = arith.subf %249, %165 : vector<1x128xf32>
    %251 = arith.addf %125, %250 : vector<1x128xf32>
    %cst_77 = arith.constant 1.250000e-01 : f32
    %252 = vector.broadcast %cst_77 : f32 to vector<4x128xf32>
    %253 = arith.mulf %252, %130 : vector<4x128xf32>
    %254 = arith.addf %128, %253 : vector<4x128xf32>
    %c2 = arith.constant 2 : index
    %c0_78 = arith.constant 0 : index
    %c0_79 = arith.constant 0 : index
    %255 = vector.load %arg2[%c2, %c0_78, %c0_79] : memref<8x4x128xf32, #tpu.memory_space<vmem>>, vector<1x4x128xf32>
    %256 = vector.shape_cast %255 : vector<1x4x128xf32> to vector<4x128xf32>
    %c2_80 = arith.constant 2 : index
    %c0_81 = arith.constant 0 : index
    %257 = vector.load %arg4[%c2_80, %c0_81] : memref<8x128xf32, #tpu.memory_space<vmem>>, vector<1x128xf32>
    %c2_82 = arith.constant 2 : index
    %c0_83 = arith.constant 0 : index
    %258 = vector.load %arg5[%c2_82, %c0_83] : memref<8x128xf32, #tpu.memory_space<vmem>>, vector<1x128xf32>
    %c2_84 = arith.constant 2 : index
    %c0_85 = arith.constant 0 : index
    %259 = vector.load %arg6[%c2_84, %c0_85] : memref<8x128xf32, #tpu.memory_space<vmem>>, vector<1x128xf32>
    %260 = arith.mulf %256, %256 : vector<4x128xf32>
    %261 = vector.extract_strided_slice %260 {offsets = [0, 0], sizes = [1, 128], strides = [1, 1]} : vector<4x128xf32> to vector<1x128xf32>
    %262 = vector.extract_strided_slice %260 {offsets = [1, 0], sizes = [1, 128], strides = [1, 1]} : vector<4x128xf32> to vector<1x128xf32>
    %263 = arith.addf %261, %262 : vector<1x128xf32>
    %264 = vector.extract_strided_slice %260 {offsets = [2, 0], sizes = [1, 128], strides = [1, 1]} : vector<4x128xf32> to vector<1x128xf32>
    %265 = arith.addf %263, %264 : vector<1x128xf32>
    %266 = vector.extract_strided_slice %260 {offsets = [3, 0], sizes = [1, 128], strides = [1, 1]} : vector<4x128xf32> to vector<1x128xf32>
    %267 = arith.addf %265, %266 : vector<1x128xf32>
    %268 = arith.mulf %254, %254 : vector<4x128xf32>
    %269 = vector.extract_strided_slice %268 {offsets = [0, 0], sizes = [1, 128], strides = [1, 1]} : vector<4x128xf32> to vector<1x128xf32>
    %270 = vector.extract_strided_slice %268 {offsets = [1, 0], sizes = [1, 128], strides = [1, 1]} : vector<4x128xf32> to vector<1x128xf32>
    %271 = arith.addf %269, %270 : vector<1x128xf32>
    %272 = vector.extract_strided_slice %268 {offsets = [2, 0], sizes = [1, 128], strides = [1, 1]} : vector<4x128xf32> to vector<1x128xf32>
    %273 = arith.addf %271, %272 : vector<1x128xf32>
    %274 = vector.extract_strided_slice %268 {offsets = [3, 0], sizes = [1, 128], strides = [1, 1]} : vector<4x128xf32> to vector<1x128xf32>
    %275 = arith.addf %273, %274 : vector<1x128xf32>
    %276 = arith.mulf %254, %256 : vector<4x128xf32>
    %277 = vector.extract_strided_slice %276 {offsets = [0, 0], sizes = [1, 128], strides = [1, 1]} : vector<4x128xf32> to vector<1x128xf32>
    %278 = vector.extract_strided_slice %276 {offsets = [1, 0], sizes = [1, 128], strides = [1, 1]} : vector<4x128xf32> to vector<1x128xf32>
    %279 = arith.addf %277, %278 : vector<1x128xf32>
    %280 = vector.extract_strided_slice %276 {offsets = [2, 0], sizes = [1, 128], strides = [1, 1]} : vector<4x128xf32> to vector<1x128xf32>
    %281 = arith.addf %279, %280 : vector<1x128xf32>
    %282 = vector.extract_strided_slice %276 {offsets = [3, 0], sizes = [1, 128], strides = [1, 1]} : vector<4x128xf32> to vector<1x128xf32>
    %283 = arith.addf %281, %282 : vector<1x128xf32>
    %284 = arith.subf %1, %275 : vector<1x128xf32>
    %285 = arith.mulf %257, %284 : vector<1x128xf32>
    %cst_86 = arith.constant 2.000000e+00 : f32
    %286 = vector.broadcast %cst_86 : f32 to vector<1x128xf32>
    %287 = arith.mulf %286, %283 : vector<1x128xf32>
    %288 = arith.mulf %287, %258 : vector<1x128xf32>
    %289 = arith.subf %285, %288 : vector<1x128xf32>
    %290 = arith.mulf %267, %259 : vector<1x128xf32>
    %291 = arith.subf %289, %290 : vector<1x128xf32>
    %292 = arith.subf %1, %275 : vector<1x128xf32>
    %293 = math.exp %292 : vector<1x128xf32>
    %cst_87 = arith.constant 9.99999997E-7 : f32
    %294 = vector.broadcast %cst_87 : f32 to vector<1x128xf32>
    %295 = arith.maximumf %267, %294 : vector<1x128xf32>
    %296 = math.rsqrt %295 : vector<1x128xf32>
    %297 = arith.mulf %295, %296 : vector<1x128xf32>
    %298 = arith.mulf %283, %296 : vector<1x128xf32>
    %cst_88 = arith.constant 1.250000e-01 : f32
    %299 = vector.broadcast %cst_88 : f32 to vector<1x128xf32>
    %300 = arith.mulf %299, %297 : vector<1x128xf32>
    %301 = arith.addf %300, %298 : vector<1x128xf32>
    %cst_89 = arith.constant 0.000000e+00 : f32
    %302 = vector.broadcast %cst_89 : f32 to vector<1x128xf32>
    %303 = arith.cmpf oge, %298, %302 : vector<1x128xf32>
    %cst_90 = arith.constant 1.000000e+00 : f32
    %cst_91 = arith.constant -1.000000e+00 : f32
    %304 = vector.broadcast %cst_90 : f32 to vector<1x128xf32>
    %305 = vector.broadcast %cst_91 : f32 to vector<1x128xf32>
    %306 = arith.select %303, %304, %305 : vector<1x128xi1>, vector<1x128xf32>
    %307 = math.absf %298 : vector<1x128xf32>
    %cst_92 = arith.constant 0.327591091 : f32
    %308 = vector.broadcast %cst_92 : f32 to vector<1x128xf32>
    %309 = arith.mulf %308, %307 : vector<1x128xf32>
    %cst_93 = arith.constant 1.000000e+00 : f32
    %310 = vector.broadcast %cst_93 : f32 to vector<1x128xf32>
    %311 = arith.addf %310, %309 : vector<1x128xf32>
    %cst_94 = arith.constant 1.000000e+00 : f32
    %312 = vector.broadcast %cst_94 : f32 to vector<1x128xf32>
    %313 = arith.divf %312, %311 : vector<1x128xf32>
    %cst_95 = arith.constant 1.06140542 : f32
    %314 = vector.broadcast %cst_95 : f32 to vector<1x128xf32>
    %315 = arith.mulf %313, %314 : vector<1x128xf32>
    %cst_96 = arith.constant -1.45315206 : f32
    %316 = vector.broadcast %cst_96 : f32 to vector<1x128xf32>
    %317 = arith.addf %316, %315 : vector<1x128xf32>
    %318 = arith.mulf %313, %317 : vector<1x128xf32>
    %cst_97 = arith.constant 1.42141378 : f32
    %319 = vector.broadcast %cst_97 : f32 to vector<1x128xf32>
    %320 = arith.addf %319, %318 : vector<1x128xf32>
    %321 = arith.mulf %313, %320 : vector<1x128xf32>
    %cst_98 = arith.constant -0.284496725 : f32
    %322 = vector.broadcast %cst_98 : f32 to vector<1x128xf32>
    %323 = arith.addf %322, %321 : vector<1x128xf32>
    %324 = arith.mulf %313, %323 : vector<1x128xf32>
    %cst_99 = arith.constant 0.254829586 : f32
    %325 = vector.broadcast %cst_99 : f32 to vector<1x128xf32>
    %326 = arith.addf %325, %324 : vector<1x128xf32>
    %327 = arith.mulf %313, %326 : vector<1x128xf32>
    %cst_100 = arith.constant 0.000000e+00 : f32
    %328 = vector.broadcast %cst_100 : f32 to vector<1x128xf32>
    %329 = arith.cmpf oge, %301, %328 : vector<1x128xf32>
    %cst_101 = arith.constant 1.000000e+00 : f32
    %cst_102 = arith.constant -1.000000e+00 : f32
    %330 = vector.broadcast %cst_101 : f32 to vector<1x128xf32>
    %331 = vector.broadcast %cst_102 : f32 to vector<1x128xf32>
    %332 = arith.select %329, %330, %331 : vector<1x128xi1>, vector<1x128xf32>
    %333 = math.absf %301 : vector<1x128xf32>
    %cst_103 = arith.constant 0.327591091 : f32
    %334 = vector.broadcast %cst_103 : f32 to vector<1x128xf32>
    %335 = arith.mulf %334, %333 : vector<1x128xf32>
    %cst_104 = arith.constant 1.000000e+00 : f32
    %336 = vector.broadcast %cst_104 : f32 to vector<1x128xf32>
    %337 = arith.addf %336, %335 : vector<1x128xf32>
    %cst_105 = arith.constant 1.000000e+00 : f32
    %338 = vector.broadcast %cst_105 : f32 to vector<1x128xf32>
    %339 = arith.divf %338, %337 : vector<1x128xf32>
    %cst_106 = arith.constant 1.06140542 : f32
    %340 = vector.broadcast %cst_106 : f32 to vector<1x128xf32>
    %341 = arith.mulf %339, %340 : vector<1x128xf32>
    %cst_107 = arith.constant -1.45315206 : f32
    %342 = vector.broadcast %cst_107 : f32 to vector<1x128xf32>
    %343 = arith.addf %342, %341 : vector<1x128xf32>
    %344 = arith.mulf %339, %343 : vector<1x128xf32>
    %cst_108 = arith.constant 1.42141378 : f32
    %345 = vector.broadcast %cst_108 : f32 to vector<1x128xf32>
    %346 = arith.addf %345, %344 : vector<1x128xf32>
    %347 = arith.mulf %339, %346 : vector<1x128xf32>
    %cst_109 = arith.constant -0.284496725 : f32
    %348 = vector.broadcast %cst_109 : f32 to vector<1x128xf32>
    %349 = arith.addf %348, %347 : vector<1x128xf32>
    %350 = arith.mulf %339, %349 : vector<1x128xf32>
    %cst_110 = arith.constant 0.254829586 : f32
    %351 = vector.broadcast %cst_110 : f32 to vector<1x128xf32>
    %352 = arith.addf %351, %350 : vector<1x128xf32>
    %353 = arith.mulf %339, %352 : vector<1x128xf32>
    %354 = arith.mulf %298, %298 : vector<1x128xf32>
    %355 = math.exp %354 : vector<1x128xf32>
    %356 = arith.subf %332, %306 : vector<1x128xf32>
    %357 = arith.mulf %356, %355 : vector<1x128xf32>
    %358 = arith.mulf %332, %353 : vector<1x128xf32>
    %359 = arith.mulf %298, %298 : vector<1x128xf32>
    %360 = arith.mulf %301, %301 : vector<1x128xf32>
    %361 = arith.subf %359, %360 : vector<1x128xf32>
    %362 = math.exp %361 : vector<1x128xf32>
    %363 = arith.mulf %358, %362 : vector<1x128xf32>
    %364 = arith.subf %357, %363 : vector<1x128xf32>
    %365 = arith.mulf %306, %327 : vector<1x128xf32>
    %366 = arith.addf %364, %365 : vector<1x128xf32>
    %cst_111 = arith.constant 0.886226952 : f32
    %367 = vector.broadcast %cst_111 : f32 to vector<1x128xf32>
    %368 = arith.mulf %367, %296 : vector<1x128xf32>
    %369 = arith.mulf %368, %293 : vector<1x128xf32>
    %370 = arith.mulf %369, %366 : vector<1x128xf32>
    %cst_112 = arith.constant 1.250000e-01 : f32
    %371 = vector.broadcast %cst_112 : f32 to vector<1x128xf32>
    %372 = arith.mulf %371, %293 : vector<1x128xf32>
    %cst_113 = arith.constant 9.99999997E-7 : f32
    %373 = vector.broadcast %cst_113 : f32 to vector<1x128xf32>
    %374 = arith.cmpf ogt, %267, %373 : vector<1x128xf32>
    %375 = arith.select %374, %370, %372 : vector<1x128xi1>, vector<1x128xf32>
    %376 = arith.subf %375, %291 : vector<1x128xf32>
    %377 = arith.addf %251, %376 : vector<1x128xf32>
    %cst_114 = arith.constant 1.250000e-01 : f32
    %378 = vector.broadcast %cst_114 : f32 to vector<4x128xf32>
    %379 = arith.mulf %378, %256 : vector<4x128xf32>
    %380 = arith.addf %254, %379 : vector<4x128xf32>
    %c3 = arith.constant 3 : index
    %c0_115 = arith.constant 0 : index
    %c0_116 = arith.constant 0 : index
    %381 = vector.load %arg2[%c3, %c0_115, %c0_116] : memref<8x4x128xf32, #tpu.memory_space<vmem>>, vector<1x4x128xf32>
    %382 = vector.shape_cast %381 : vector<1x4x128xf32> to vector<4x128xf32>
    %c3_117 = arith.constant 3 : index
    %c0_118 = arith.constant 0 : index
    %383 = vector.load %arg4[%c3_117, %c0_118] : memref<8x128xf32, #tpu.memory_space<vmem>>, vector<1x128xf32>
    %c3_119 = arith.constant 3 : index
    %c0_120 = arith.constant 0 : index
    %384 = vector.load %arg5[%c3_119, %c0_120] : memref<8x128xf32, #tpu.memory_space<vmem>>, vector<1x128xf32>
    %c3_121 = arith.constant 3 : index
    %c0_122 = arith.constant 0 : index
    %385 = vector.load %arg6[%c3_121, %c0_122] : memref<8x128xf32, #tpu.memory_space<vmem>>, vector<1x128xf32>
    %386 = arith.mulf %382, %382 : vector<4x128xf32>
    %387 = vector.extract_strided_slice %386 {offsets = [0, 0], sizes = [1, 128], strides = [1, 1]} : vector<4x128xf32> to vector<1x128xf32>
    %388 = vector.extract_strided_slice %386 {offsets = [1, 0], sizes = [1, 128], strides = [1, 1]} : vector<4x128xf32> to vector<1x128xf32>
    %389 = arith.addf %387, %388 : vector<1x128xf32>
    %390 = vector.extract_strided_slice %386 {offsets = [2, 0], sizes = [1, 128], strides = [1, 1]} : vector<4x128xf32> to vector<1x128xf32>
    %391 = arith.addf %389, %390 : vector<1x128xf32>
    %392 = vector.extract_strided_slice %386 {offsets = [3, 0], sizes = [1, 128], strides = [1, 1]} : vector<4x128xf32> to vector<1x128xf32>
    %393 = arith.addf %391, %392 : vector<1x128xf32>
    %394 = arith.mulf %380, %380 : vector<4x128xf32>
    %395 = vector.extract_strided_slice %394 {offsets = [0, 0], sizes = [1, 128], strides = [1, 1]} : vector<4x128xf32> to vector<1x128xf32>
    %396 = vector.extract_strided_slice %394 {offsets = [1, 0], sizes = [1, 128], strides = [1, 1]} : vector<4x128xf32> to vector<1x128xf32>
    %397 = arith.addf %395, %396 : vector<1x128xf32>
    %398 = vector.extract_strided_slice %394 {offsets = [2, 0], sizes = [1, 128], strides = [1, 1]} : vector<4x128xf32> to vector<1x128xf32>
    %399 = arith.addf %397, %398 : vector<1x128xf32>
    %400 = vector.extract_strided_slice %394 {offsets = [3, 0], sizes = [1, 128], strides = [1, 1]} : vector<4x128xf32> to vector<1x128xf32>
    %401 = arith.addf %399, %400 : vector<1x128xf32>
    %402 = arith.mulf %380, %382 : vector<4x128xf32>
    %403 = vector.extract_strided_slice %402 {offsets = [0, 0], sizes = [1, 128], strides = [1, 1]} : vector<4x128xf32> to vector<1x128xf32>
    %404 = vector.extract_strided_slice %402 {offsets = [1, 0], sizes = [1, 128], strides = [1, 1]} : vector<4x128xf32> to vector<1x128xf32>
    %405 = arith.addf %403, %404 : vector<1x128xf32>
    %406 = vector.extract_strided_slice %402 {offsets = [2, 0], sizes = [1, 128], strides = [1, 1]} : vector<4x128xf32> to vector<1x128xf32>
    %407 = arith.addf %405, %406 : vector<1x128xf32>
    %408 = vector.extract_strided_slice %402 {offsets = [3, 0], sizes = [1, 128], strides = [1, 1]} : vector<4x128xf32> to vector<1x128xf32>
    %409 = arith.addf %407, %408 : vector<1x128xf32>
    %410 = arith.subf %1, %401 : vector<1x128xf32>
    %411 = arith.mulf %383, %410 : vector<1x128xf32>
    %cst_123 = arith.constant 2.000000e+00 : f32
    %412 = vector.broadcast %cst_123 : f32 to vector<1x128xf32>
    %413 = arith.mulf %412, %409 : vector<1x128xf32>
    %414 = arith.mulf %413, %384 : vector<1x128xf32>
    %415 = arith.subf %411, %414 : vector<1x128xf32>
    %416 = arith.mulf %393, %385 : vector<1x128xf32>
    %417 = arith.subf %415, %416 : vector<1x128xf32>
    %418 = arith.subf %1, %401 : vector<1x128xf32>
    %419 = math.exp %418 : vector<1x128xf32>
    %cst_124 = arith.constant 9.99999997E-7 : f32
    %420 = vector.broadcast %cst_124 : f32 to vector<1x128xf32>
    %421 = arith.maximumf %393, %420 : vector<1x128xf32>
    %422 = math.rsqrt %421 : vector<1x128xf32>
    %423 = arith.mulf %421, %422 : vector<1x128xf32>
    %424 = arith.mulf %409, %422 : vector<1x128xf32>
    %cst_125 = arith.constant 1.250000e-01 : f32
    %425 = vector.broadcast %cst_125 : f32 to vector<1x128xf32>
    %426 = arith.mulf %425, %423 : vector<1x128xf32>
    %427 = arith.addf %426, %424 : vector<1x128xf32>
    %cst_126 = arith.constant 0.000000e+00 : f32
    %428 = vector.broadcast %cst_126 : f32 to vector<1x128xf32>
    %429 = arith.cmpf oge, %424, %428 : vector<1x128xf32>
    %cst_127 = arith.constant 1.000000e+00 : f32
    %cst_128 = arith.constant -1.000000e+00 : f32
    %430 = vector.broadcast %cst_127 : f32 to vector<1x128xf32>
    %431 = vector.broadcast %cst_128 : f32 to vector<1x128xf32>
    %432 = arith.select %429, %430, %431 : vector<1x128xi1>, vector<1x128xf32>
    %433 = math.absf %424 : vector<1x128xf32>
    %cst_129 = arith.constant 0.327591091 : f32
    %434 = vector.broadcast %cst_129 : f32 to vector<1x128xf32>
    %435 = arith.mulf %434, %433 : vector<1x128xf32>
    %cst_130 = arith.constant 1.000000e+00 : f32
    %436 = vector.broadcast %cst_130 : f32 to vector<1x128xf32>
    %437 = arith.addf %436, %435 : vector<1x128xf32>
    %cst_131 = arith.constant 1.000000e+00 : f32
    %438 = vector.broadcast %cst_131 : f32 to vector<1x128xf32>
    %439 = arith.divf %438, %437 : vector<1x128xf32>
    %cst_132 = arith.constant 1.06140542 : f32
    %440 = vector.broadcast %cst_132 : f32 to vector<1x128xf32>
    %441 = arith.mulf %439, %440 : vector<1x128xf32>
    %cst_133 = arith.constant -1.45315206 : f32
    %442 = vector.broadcast %cst_133 : f32 to vector<1x128xf32>
    %443 = arith.addf %442, %441 : vector<1x128xf32>
    %444 = arith.mulf %439, %443 : vector<1x128xf32>
    %cst_134 = arith.constant 1.42141378 : f32
    %445 = vector.broadcast %cst_134 : f32 to vector<1x128xf32>
    %446 = arith.addf %445, %444 : vector<1x128xf32>
    %447 = arith.mulf %439, %446 : vector<1x128xf32>
    %cst_135 = arith.constant -0.284496725 : f32
    %448 = vector.broadcast %cst_135 : f32 to vector<1x128xf32>
    %449 = arith.addf %448, %447 : vector<1x128xf32>
    %450 = arith.mulf %439, %449 : vector<1x128xf32>
    %cst_136 = arith.constant 0.254829586 : f32
    %451 = vector.broadcast %cst_136 : f32 to vector<1x128xf32>
    %452 = arith.addf %451, %450 : vector<1x128xf32>
    %453 = arith.mulf %439, %452 : vector<1x128xf32>
    %cst_137 = arith.constant 0.000000e+00 : f32
    %454 = vector.broadcast %cst_137 : f32 to vector<1x128xf32>
    %455 = arith.cmpf oge, %427, %454 : vector<1x128xf32>
    %cst_138 = arith.constant 1.000000e+00 : f32
    %cst_139 = arith.constant -1.000000e+00 : f32
    %456 = vector.broadcast %cst_138 : f32 to vector<1x128xf32>
    %457 = vector.broadcast %cst_139 : f32 to vector<1x128xf32>
    %458 = arith.select %455, %456, %457 : vector<1x128xi1>, vector<1x128xf32>
    %459 = math.absf %427 : vector<1x128xf32>
    %cst_140 = arith.constant 0.327591091 : f32
    %460 = vector.broadcast %cst_140 : f32 to vector<1x128xf32>
    %461 = arith.mulf %460, %459 : vector<1x128xf32>
    %cst_141 = arith.constant 1.000000e+00 : f32
    %462 = vector.broadcast %cst_141 : f32 to vector<1x128xf32>
    %463 = arith.addf %462, %461 : vector<1x128xf32>
    %cst_142 = arith.constant 1.000000e+00 : f32
    %464 = vector.broadcast %cst_142 : f32 to vector<1x128xf32>
    %465 = arith.divf %464, %463 : vector<1x128xf32>
    %cst_143 = arith.constant 1.06140542 : f32
    %466 = vector.broadcast %cst_143 : f32 to vector<1x128xf32>
    %467 = arith.mulf %465, %466 : vector<1x128xf32>
    %cst_144 = arith.constant -1.45315206 : f32
    %468 = vector.broadcast %cst_144 : f32 to vector<1x128xf32>
    %469 = arith.addf %468, %467 : vector<1x128xf32>
    %470 = arith.mulf %465, %469 : vector<1x128xf32>
    %cst_145 = arith.constant 1.42141378 : f32
    %471 = vector.broadcast %cst_145 : f32 to vector<1x128xf32>
    %472 = arith.addf %471, %470 : vector<1x128xf32>
    %473 = arith.mulf %465, %472 : vector<1x128xf32>
    %cst_146 = arith.constant -0.284496725 : f32
    %474 = vector.broadcast %cst_146 : f32 to vector<1x128xf32>
    %475 = arith.addf %474, %473 : vector<1x128xf32>
    %476 = arith.mulf %465, %475 : vector<1x128xf32>
    %cst_147 = arith.constant 0.254829586 : f32
    %477 = vector.broadcast %cst_147 : f32 to vector<1x128xf32>
    %478 = arith.addf %477, %476 : vector<1x128xf32>
    %479 = arith.mulf %465, %478 : vector<1x128xf32>
    %480 = arith.mulf %424, %424 : vector<1x128xf32>
    %481 = math.exp %480 : vector<1x128xf32>
    %482 = arith.subf %458, %432 : vector<1x128xf32>
    %483 = arith.mulf %482, %481 : vector<1x128xf32>
    %484 = arith.mulf %458, %479 : vector<1x128xf32>
    %485 = arith.mulf %424, %424 : vector<1x128xf32>
    %486 = arith.mulf %427, %427 : vector<1x128xf32>
    %487 = arith.subf %485, %486 : vector<1x128xf32>
    %488 = math.exp %487 : vector<1x128xf32>
    %489 = arith.mulf %484, %488 : vector<1x128xf32>
    %490 = arith.subf %483, %489 : vector<1x128xf32>
    %491 = arith.mulf %432, %453 : vector<1x128xf32>
    %492 = arith.addf %490, %491 : vector<1x128xf32>
    %cst_148 = arith.constant 0.886226952 : f32
    %493 = vector.broadcast %cst_148 : f32 to vector<1x128xf32>
    %494 = arith.mulf %493, %422 : vector<1x128xf32>
    %495 = arith.mulf %494, %419 : vector<1x128xf32>
    %496 = arith.mulf %495, %492 : vector<1x128xf32>
    %cst_149 = arith.constant 1.250000e-01 : f32
    %497 = vector.broadcast %cst_149 : f32 to vector<1x128xf32>
    %498 = arith.mulf %497, %419 : vector<1x128xf32>
    %cst_150 = arith.constant 9.99999997E-7 : f32
    %499 = vector.broadcast %cst_150 : f32 to vector<1x128xf32>
    %500 = arith.cmpf ogt, %393, %499 : vector<1x128xf32>
    %501 = arith.select %500, %496, %498 : vector<1x128xi1>, vector<1x128xf32>
    %502 = arith.subf %501, %417 : vector<1x128xf32>
    %503 = arith.addf %377, %502 : vector<1x128xf32>
    %cst_151 = arith.constant 1.250000e-01 : f32
    %504 = vector.broadcast %cst_151 : f32 to vector<4x128xf32>
    %505 = arith.mulf %504, %382 : vector<4x128xf32>
    %506 = arith.addf %380, %505 : vector<4x128xf32>
    %c4 = arith.constant 4 : index
    %c0_152 = arith.constant 0 : index
    %c0_153 = arith.constant 0 : index
    %507 = vector.load %arg2[%c4, %c0_152, %c0_153] : memref<8x4x128xf32, #tpu.memory_space<vmem>>, vector<1x4x128xf32>
    %508 = vector.shape_cast %507 : vector<1x4x128xf32> to vector<4x128xf32>
    %c4_154 = arith.constant 4 : index
    %c0_155 = arith.constant 0 : index
    %509 = vector.load %arg4[%c4_154, %c0_155] : memref<8x128xf32, #tpu.memory_space<vmem>>, vector<1x128xf32>
    %c4_156 = arith.constant 4 : index
    %c0_157 = arith.constant 0 : index
    %510 = vector.load %arg5[%c4_156, %c0_157] : memref<8x128xf32, #tpu.memory_space<vmem>>, vector<1x128xf32>
    %c4_158 = arith.constant 4 : index
    %c0_159 = arith.constant 0 : index
    %511 = vector.load %arg6[%c4_158, %c0_159] : memref<8x128xf32, #tpu.memory_space<vmem>>, vector<1x128xf32>
    %512 = arith.mulf %508, %508 : vector<4x128xf32>
    %513 = vector.extract_strided_slice %512 {offsets = [0, 0], sizes = [1, 128], strides = [1, 1]} : vector<4x128xf32> to vector<1x128xf32>
    %514 = vector.extract_strided_slice %512 {offsets = [1, 0], sizes = [1, 128], strides = [1, 1]} : vector<4x128xf32> to vector<1x128xf32>
    %515 = arith.addf %513, %514 : vector<1x128xf32>
    %516 = vector.extract_strided_slice %512 {offsets = [2, 0], sizes = [1, 128], strides = [1, 1]} : vector<4x128xf32> to vector<1x128xf32>
    %517 = arith.addf %515, %516 : vector<1x128xf32>
    %518 = vector.extract_strided_slice %512 {offsets = [3, 0], sizes = [1, 128], strides = [1, 1]} : vector<4x128xf32> to vector<1x128xf32>
    %519 = arith.addf %517, %518 : vector<1x128xf32>
    %520 = arith.mulf %506, %506 : vector<4x128xf32>
    %521 = vector.extract_strided_slice %520 {offsets = [0, 0], sizes = [1, 128], strides = [1, 1]} : vector<4x128xf32> to vector<1x128xf32>
    %522 = vector.extract_strided_slice %520 {offsets = [1, 0], sizes = [1, 128], strides = [1, 1]} : vector<4x128xf32> to vector<1x128xf32>
    %523 = arith.addf %521, %522 : vector<1x128xf32>
    %524 = vector.extract_strided_slice %520 {offsets = [2, 0], sizes = [1, 128], strides = [1, 1]} : vector<4x128xf32> to vector<1x128xf32>
    %525 = arith.addf %523, %524 : vector<1x128xf32>
    %526 = vector.extract_strided_slice %520 {offsets = [3, 0], sizes = [1, 128], strides = [1, 1]} : vector<4x128xf32> to vector<1x128xf32>
    %527 = arith.addf %525, %526 : vector<1x128xf32>
    %528 = arith.mulf %506, %508 : vector<4x128xf32>
    %529 = vector.extract_strided_slice %528 {offsets = [0, 0], sizes = [1, 128], strides = [1, 1]} : vector<4x128xf32> to vector<1x128xf32>
    %530 = vector.extract_strided_slice %528 {offsets = [1, 0], sizes = [1, 128], strides = [1, 1]} : vector<4x128xf32> to vector<1x128xf32>
    %531 = arith.addf %529, %530 : vector<1x128xf32>
    %532 = vector.extract_strided_slice %528 {offsets = [2, 0], sizes = [1, 128], strides = [1, 1]} : vector<4x128xf32> to vector<1x128xf32>
    %533 = arith.addf %531, %532 : vector<1x128xf32>
    %534 = vector.extract_strided_slice %528 {offsets = [3, 0], sizes = [1, 128], strides = [1, 1]} : vector<4x128xf32> to vector<1x128xf32>
    %535 = arith.addf %533, %534 : vector<1x128xf32>
    %536 = arith.subf %1, %527 : vector<1x128xf32>
    %537 = arith.mulf %509, %536 : vector<1x128xf32>
    %cst_160 = arith.constant 2.000000e+00 : f32
    %538 = vector.broadcast %cst_160 : f32 to vector<1x128xf32>
    %539 = arith.mulf %538, %535 : vector<1x128xf32>
    %540 = arith.mulf %539, %510 : vector<1x128xf32>
    %541 = arith.subf %537, %540 : vector<1x128xf32>
    %542 = arith.mulf %519, %511 : vector<1x128xf32>
    %543 = arith.subf %541, %542 : vector<1x128xf32>
    %544 = arith.subf %1, %527 : vector<1x128xf32>
    %545 = math.exp %544 : vector<1x128xf32>
    %cst_161 = arith.constant 9.99999997E-7 : f32
    %546 = vector.broadcast %cst_161 : f32 to vector<1x128xf32>
    %547 = arith.maximumf %519, %546 : vector<1x128xf32>
    %548 = math.rsqrt %547 : vector<1x128xf32>
    %549 = arith.mulf %547, %548 : vector<1x128xf32>
    %550 = arith.mulf %535, %548 : vector<1x128xf32>
    %cst_162 = arith.constant 1.250000e-01 : f32
    %551 = vector.broadcast %cst_162 : f32 to vector<1x128xf32>
    %552 = arith.mulf %551, %549 : vector<1x128xf32>
    %553 = arith.addf %552, %550 : vector<1x128xf32>
    %cst_163 = arith.constant 0.000000e+00 : f32
    %554 = vector.broadcast %cst_163 : f32 to vector<1x128xf32>
    %555 = arith.cmpf oge, %550, %554 : vector<1x128xf32>
    %cst_164 = arith.constant 1.000000e+00 : f32
    %cst_165 = arith.constant -1.000000e+00 : f32
    %556 = vector.broadcast %cst_164 : f32 to vector<1x128xf32>
    %557 = vector.broadcast %cst_165 : f32 to vector<1x128xf32>
    %558 = arith.select %555, %556, %557 : vector<1x128xi1>, vector<1x128xf32>
    %559 = math.absf %550 : vector<1x128xf32>
    %cst_166 = arith.constant 0.327591091 : f32
    %560 = vector.broadcast %cst_166 : f32 to vector<1x128xf32>
    %561 = arith.mulf %560, %559 : vector<1x128xf32>
    %cst_167 = arith.constant 1.000000e+00 : f32
    %562 = vector.broadcast %cst_167 : f32 to vector<1x128xf32>
    %563 = arith.addf %562, %561 : vector<1x128xf32>
    %cst_168 = arith.constant 1.000000e+00 : f32
    %564 = vector.broadcast %cst_168 : f32 to vector<1x128xf32>
    %565 = arith.divf %564, %563 : vector<1x128xf32>
    %cst_169 = arith.constant 1.06140542 : f32
    %566 = vector.broadcast %cst_169 : f32 to vector<1x128xf32>
    %567 = arith.mulf %565, %566 : vector<1x128xf32>
    %cst_170 = arith.constant -1.45315206 : f32
    %568 = vector.broadcast %cst_170 : f32 to vector<1x128xf32>
    %569 = arith.addf %568, %567 : vector<1x128xf32>
    %570 = arith.mulf %565, %569 : vector<1x128xf32>
    %cst_171 = arith.constant 1.42141378 : f32
    %571 = vector.broadcast %cst_171 : f32 to vector<1x128xf32>
    %572 = arith.addf %571, %570 : vector<1x128xf32>
    %573 = arith.mulf %565, %572 : vector<1x128xf32>
    %cst_172 = arith.constant -0.284496725 : f32
    %574 = vector.broadcast %cst_172 : f32 to vector<1x128xf32>
    %575 = arith.addf %574, %573 : vector<1x128xf32>
    %576 = arith.mulf %565, %575 : vector<1x128xf32>
    %cst_173 = arith.constant 0.254829586 : f32
    %577 = vector.broadcast %cst_173 : f32 to vector<1x128xf32>
    %578 = arith.addf %577, %576 : vector<1x128xf32>
    %579 = arith.mulf %565, %578 : vector<1x128xf32>
    %cst_174 = arith.constant 0.000000e+00 : f32
    %580 = vector.broadcast %cst_174 : f32 to vector<1x128xf32>
    %581 = arith.cmpf oge, %553, %580 : vector<1x128xf32>
    %cst_175 = arith.constant 1.000000e+00 : f32
    %cst_176 = arith.constant -1.000000e+00 : f32
    %582 = vector.broadcast %cst_175 : f32 to vector<1x128xf32>
    %583 = vector.broadcast %cst_176 : f32 to vector<1x128xf32>
    %584 = arith.select %581, %582, %583 : vector<1x128xi1>, vector<1x128xf32>
    %585 = math.absf %553 : vector<1x128xf32>
    %cst_177 = arith.constant 0.327591091 : f32
    %586 = vector.broadcast %cst_177 : f32 to vector<1x128xf32>
    %587 = arith.mulf %586, %585 : vector<1x128xf32>
    %cst_178 = arith.constant 1.000000e+00 : f32
    %588 = vector.broadcast %cst_178 : f32 to vector<1x128xf32>
    %589 = arith.addf %588, %587 : vector<1x128xf32>
    %cst_179 = arith.constant 1.000000e+00 : f32
    %590 = vector.broadcast %cst_179 : f32 to vector<1x128xf32>
    %591 = arith.divf %590, %589 : vector<1x128xf32>
    %cst_180 = arith.constant 1.06140542 : f32
    %592 = vector.broadcast %cst_180 : f32 to vector<1x128xf32>
    %593 = arith.mulf %591, %592 : vector<1x128xf32>
    %cst_181 = arith.constant -1.45315206 : f32
    %594 = vector.broadcast %cst_181 : f32 to vector<1x128xf32>
    %595 = arith.addf %594, %593 : vector<1x128xf32>
    %596 = arith.mulf %591, %595 : vector<1x128xf32>
    %cst_182 = arith.constant 1.42141378 : f32
    %597 = vector.broadcast %cst_182 : f32 to vector<1x128xf32>
    %598 = arith.addf %597, %596 : vector<1x128xf32>
    %599 = arith.mulf %591, %598 : vector<1x128xf32>
    %cst_183 = arith.constant -0.284496725 : f32
    %600 = vector.broadcast %cst_183 : f32 to vector<1x128xf32>
    %601 = arith.addf %600, %599 : vector<1x128xf32>
    %602 = arith.mulf %591, %601 : vector<1x128xf32>
    %cst_184 = arith.constant 0.254829586 : f32
    %603 = vector.broadcast %cst_184 : f32 to vector<1x128xf32>
    %604 = arith.addf %603, %602 : vector<1x128xf32>
    %605 = arith.mulf %591, %604 : vector<1x128xf32>
    %606 = arith.mulf %550, %550 : vector<1x128xf32>
    %607 = math.exp %606 : vector<1x128xf32>
    %608 = arith.subf %584, %558 : vector<1x128xf32>
    %609 = arith.mulf %608, %607 : vector<1x128xf32>
    %610 = arith.mulf %584, %605 : vector<1x128xf32>
    %611 = arith.mulf %550, %550 : vector<1x128xf32>
    %612 = arith.mulf %553, %553 : vector<1x128xf32>
    %613 = arith.subf %611, %612 : vector<1x128xf32>
    %614 = math.exp %613 : vector<1x128xf32>
    %615 = arith.mulf %610, %614 : vector<1x128xf32>
    %616 = arith.subf %609, %615 : vector<1x128xf32>
    %617 = arith.mulf %558, %579 : vector<1x128xf32>
    %618 = arith.addf %616, %617 : vector<1x128xf32>
    %cst_185 = arith.constant 0.886226952 : f32
    %619 = vector.broadcast %cst_185 : f32 to vector<1x128xf32>
    %620 = arith.mulf %619, %548 : vector<1x128xf32>
    %621 = arith.mulf %620, %545 : vector<1x128xf32>
    %622 = arith.mulf %621, %618 : vector<1x128xf32>
    %cst_186 = arith.constant 1.250000e-01 : f32
    %623 = vector.broadcast %cst_186 : f32 to vector<1x128xf32>
    %624 = arith.mulf %623, %545 : vector<1x128xf32>
    %cst_187 = arith.constant 9.99999997E-7 : f32
    %625 = vector.broadcast %cst_187 : f32 to vector<1x128xf32>
    %626 = arith.cmpf ogt, %519, %625 : vector<1x128xf32>
    %627 = arith.select %626, %622, %624 : vector<1x128xi1>, vector<1x128xf32>
    %628 = arith.subf %627, %543 : vector<1x128xf32>
    %629 = arith.addf %503, %628 : vector<1x128xf32>
    %cst_188 = arith.constant 1.250000e-01 : f32
    %630 = vector.broadcast %cst_188 : f32 to vector<4x128xf32>
    %631 = arith.mulf %630, %508 : vector<4x128xf32>
    %632 = arith.addf %506, %631 : vector<4x128xf32>
    %c5 = arith.constant 5 : index
    %c0_189 = arith.constant 0 : index
    %c0_190 = arith.constant 0 : index
    %633 = vector.load %arg2[%c5, %c0_189, %c0_190] : memref<8x4x128xf32, #tpu.memory_space<vmem>>, vector<1x4x128xf32>
    %634 = vector.shape_cast %633 : vector<1x4x128xf32> to vector<4x128xf32>
    %c5_191 = arith.constant 5 : index
    %c0_192 = arith.constant 0 : index
    %635 = vector.load %arg4[%c5_191, %c0_192] : memref<8x128xf32, #tpu.memory_space<vmem>>, vector<1x128xf32>
    %c5_193 = arith.constant 5 : index
    %c0_194 = arith.constant 0 : index
    %636 = vector.load %arg5[%c5_193, %c0_194] : memref<8x128xf32, #tpu.memory_space<vmem>>, vector<1x128xf32>
    %c5_195 = arith.constant 5 : index
    %c0_196 = arith.constant 0 : index
    %637 = vector.load %arg6[%c5_195, %c0_196] : memref<8x128xf32, #tpu.memory_space<vmem>>, vector<1x128xf32>
    %638 = arith.mulf %634, %634 : vector<4x128xf32>
    %639 = vector.extract_strided_slice %638 {offsets = [0, 0], sizes = [1, 128], strides = [1, 1]} : vector<4x128xf32> to vector<1x128xf32>
    %640 = vector.extract_strided_slice %638 {offsets = [1, 0], sizes = [1, 128], strides = [1, 1]} : vector<4x128xf32> to vector<1x128xf32>
    %641 = arith.addf %639, %640 : vector<1x128xf32>
    %642 = vector.extract_strided_slice %638 {offsets = [2, 0], sizes = [1, 128], strides = [1, 1]} : vector<4x128xf32> to vector<1x128xf32>
    %643 = arith.addf %641, %642 : vector<1x128xf32>
    %644 = vector.extract_strided_slice %638 {offsets = [3, 0], sizes = [1, 128], strides = [1, 1]} : vector<4x128xf32> to vector<1x128xf32>
    %645 = arith.addf %643, %644 : vector<1x128xf32>
    %646 = arith.mulf %632, %632 : vector<4x128xf32>
    %647 = vector.extract_strided_slice %646 {offsets = [0, 0], sizes = [1, 128], strides = [1, 1]} : vector<4x128xf32> to vector<1x128xf32>
    %648 = vector.extract_strided_slice %646 {offsets = [1, 0], sizes = [1, 128], strides = [1, 1]} : vector<4x128xf32> to vector<1x128xf32>
    %649 = arith.addf %647, %648 : vector<1x128xf32>
    %650 = vector.extract_strided_slice %646 {offsets = [2, 0], sizes = [1, 128], strides = [1, 1]} : vector<4x128xf32> to vector<1x128xf32>
    %651 = arith.addf %649, %650 : vector<1x128xf32>
    %652 = vector.extract_strided_slice %646 {offsets = [3, 0], sizes = [1, 128], strides = [1, 1]} : vector<4x128xf32> to vector<1x128xf32>
    %653 = arith.addf %651, %652 : vector<1x128xf32>
    %654 = arith.mulf %632, %634 : vector<4x128xf32>
    %655 = vector.extract_strided_slice %654 {offsets = [0, 0], sizes = [1, 128], strides = [1, 1]} : vector<4x128xf32> to vector<1x128xf32>
    %656 = vector.extract_strided_slice %654 {offsets = [1, 0], sizes = [1, 128], strides = [1, 1]} : vector<4x128xf32> to vector<1x128xf32>
    %657 = arith.addf %655, %656 : vector<1x128xf32>
    %658 = vector.extract_strided_slice %654 {offsets = [2, 0], sizes = [1, 128], strides = [1, 1]} : vector<4x128xf32> to vector<1x128xf32>
    %659 = arith.addf %657, %658 : vector<1x128xf32>
    %660 = vector.extract_strided_slice %654 {offsets = [3, 0], sizes = [1, 128], strides = [1, 1]} : vector<4x128xf32> to vector<1x128xf32>
    %661 = arith.addf %659, %660 : vector<1x128xf32>
    %662 = arith.subf %1, %653 : vector<1x128xf32>
    %663 = arith.mulf %635, %662 : vector<1x128xf32>
    %cst_197 = arith.constant 2.000000e+00 : f32
    %664 = vector.broadcast %cst_197 : f32 to vector<1x128xf32>
    %665 = arith.mulf %664, %661 : vector<1x128xf32>
    %666 = arith.mulf %665, %636 : vector<1x128xf32>
    %667 = arith.subf %663, %666 : vector<1x128xf32>
    %668 = arith.mulf %645, %637 : vector<1x128xf32>
    %669 = arith.subf %667, %668 : vector<1x128xf32>
    %670 = arith.subf %1, %653 : vector<1x128xf32>
    %671 = math.exp %670 : vector<1x128xf32>
    %cst_198 = arith.constant 9.99999997E-7 : f32
    %672 = vector.broadcast %cst_198 : f32 to vector<1x128xf32>
    %673 = arith.maximumf %645, %672 : vector<1x128xf32>
    %674 = math.rsqrt %673 : vector<1x128xf32>
    %675 = arith.mulf %673, %674 : vector<1x128xf32>
    %676 = arith.mulf %661, %674 : vector<1x128xf32>
    %cst_199 = arith.constant 1.250000e-01 : f32
    %677 = vector.broadcast %cst_199 : f32 to vector<1x128xf32>
    %678 = arith.mulf %677, %675 : vector<1x128xf32>
    %679 = arith.addf %678, %676 : vector<1x128xf32>
    %cst_200 = arith.constant 0.000000e+00 : f32
    %680 = vector.broadcast %cst_200 : f32 to vector<1x128xf32>
    %681 = arith.cmpf oge, %676, %680 : vector<1x128xf32>
    %cst_201 = arith.constant 1.000000e+00 : f32
    %cst_202 = arith.constant -1.000000e+00 : f32
    %682 = vector.broadcast %cst_201 : f32 to vector<1x128xf32>
    %683 = vector.broadcast %cst_202 : f32 to vector<1x128xf32>
    %684 = arith.select %681, %682, %683 : vector<1x128xi1>, vector<1x128xf32>
    %685 = math.absf %676 : vector<1x128xf32>
    %cst_203 = arith.constant 0.327591091 : f32
    %686 = vector.broadcast %cst_203 : f32 to vector<1x128xf32>
    %687 = arith.mulf %686, %685 : vector<1x128xf32>
    %cst_204 = arith.constant 1.000000e+00 : f32
    %688 = vector.broadcast %cst_204 : f32 to vector<1x128xf32>
    %689 = arith.addf %688, %687 : vector<1x128xf32>
    %cst_205 = arith.constant 1.000000e+00 : f32
    %690 = vector.broadcast %cst_205 : f32 to vector<1x128xf32>
    %691 = arith.divf %690, %689 : vector<1x128xf32>
    %cst_206 = arith.constant 1.06140542 : f32
    %692 = vector.broadcast %cst_206 : f32 to vector<1x128xf32>
    %693 = arith.mulf %691, %692 : vector<1x128xf32>
    %cst_207 = arith.constant -1.45315206 : f32
    %694 = vector.broadcast %cst_207 : f32 to vector<1x128xf32>
    %695 = arith.addf %694, %693 : vector<1x128xf32>
    %696 = arith.mulf %691, %695 : vector<1x128xf32>
    %cst_208 = arith.constant 1.42141378 : f32
    %697 = vector.broadcast %cst_208 : f32 to vector<1x128xf32>
    %698 = arith.addf %697, %696 : vector<1x128xf32>
    %699 = arith.mulf %691, %698 : vector<1x128xf32>
    %cst_209 = arith.constant -0.284496725 : f32
    %700 = vector.broadcast %cst_209 : f32 to vector<1x128xf32>
    %701 = arith.addf %700, %699 : vector<1x128xf32>
    %702 = arith.mulf %691, %701 : vector<1x128xf32>
    %cst_210 = arith.constant 0.254829586 : f32
    %703 = vector.broadcast %cst_210 : f32 to vector<1x128xf32>
    %704 = arith.addf %703, %702 : vector<1x128xf32>
    %705 = arith.mulf %691, %704 : vector<1x128xf32>
    %cst_211 = arith.constant 0.000000e+00 : f32
    %706 = vector.broadcast %cst_211 : f32 to vector<1x128xf32>
    %707 = arith.cmpf oge, %679, %706 : vector<1x128xf32>
    %cst_212 = arith.constant 1.000000e+00 : f32
    %cst_213 = arith.constant -1.000000e+00 : f32
    %708 = vector.broadcast %cst_212 : f32 to vector<1x128xf32>
    %709 = vector.broadcast %cst_213 : f32 to vector<1x128xf32>
    %710 = arith.select %707, %708, %709 : vector<1x128xi1>, vector<1x128xf32>
    %711 = math.absf %679 : vector<1x128xf32>
    %cst_214 = arith.constant 0.327591091 : f32
    %712 = vector.broadcast %cst_214 : f32 to vector<1x128xf32>
    %713 = arith.mulf %712, %711 : vector<1x128xf32>
    %cst_215 = arith.constant 1.000000e+00 : f32
    %714 = vector.broadcast %cst_215 : f32 to vector<1x128xf32>
    %715 = arith.addf %714, %713 : vector<1x128xf32>
    %cst_216 = arith.constant 1.000000e+00 : f32
    %716 = vector.broadcast %cst_216 : f32 to vector<1x128xf32>
    %717 = arith.divf %716, %715 : vector<1x128xf32>
    %cst_217 = arith.constant 1.06140542 : f32
    %718 = vector.broadcast %cst_217 : f32 to vector<1x128xf32>
    %719 = arith.mulf %717, %718 : vector<1x128xf32>
    %cst_218 = arith.constant -1.45315206 : f32
    %720 = vector.broadcast %cst_218 : f32 to vector<1x128xf32>
    %721 = arith.addf %720, %719 : vector<1x128xf32>
    %722 = arith.mulf %717, %721 : vector<1x128xf32>
    %cst_219 = arith.constant 1.42141378 : f32
    %723 = vector.broadcast %cst_219 : f32 to vector<1x128xf32>
    %724 = arith.addf %723, %722 : vector<1x128xf32>
    %725 = arith.mulf %717, %724 : vector<1x128xf32>
    %cst_220 = arith.constant -0.284496725 : f32
    %726 = vector.broadcast %cst_220 : f32 to vector<1x128xf32>
    %727 = arith.addf %726, %725 : vector<1x128xf32>
    %728 = arith.mulf %717, %727 : vector<1x128xf32>
    %cst_221 = arith.constant 0.254829586 : f32
    %729 = vector.broadcast %cst_221 : f32 to vector<1x128xf32>
    %730 = arith.addf %729, %728 : vector<1x128xf32>
    %731 = arith.mulf %717, %730 : vector<1x128xf32>
    %732 = arith.mulf %676, %676 : vector<1x128xf32>
    %733 = math.exp %732 : vector<1x128xf32>
    %734 = arith.subf %710, %684 : vector<1x128xf32>
    %735 = arith.mulf %734, %733 : vector<1x128xf32>
    %736 = arith.mulf %710, %731 : vector<1x128xf32>
    %737 = arith.mulf %676, %676 : vector<1x128xf32>
    %738 = arith.mulf %679, %679 : vector<1x128xf32>
    %739 = arith.subf %737, %738 : vector<1x128xf32>
    %740 = math.exp %739 : vector<1x128xf32>
    %741 = arith.mulf %736, %740 : vector<1x128xf32>
    %742 = arith.subf %735, %741 : vector<1x128xf32>
    %743 = arith.mulf %684, %705 : vector<1x128xf32>
    %744 = arith.addf %742, %743 : vector<1x128xf32>
    %cst_222 = arith.constant 0.886226952 : f32
    %745 = vector.broadcast %cst_222 : f32 to vector<1x128xf32>
    %746 = arith.mulf %745, %674 : vector<1x128xf32>
    %747 = arith.mulf %746, %671 : vector<1x128xf32>
    %748 = arith.mulf %747, %744 : vector<1x128xf32>
    %cst_223 = arith.constant 1.250000e-01 : f32
    %749 = vector.broadcast %cst_223 : f32 to vector<1x128xf32>
    %750 = arith.mulf %749, %671 : vector<1x128xf32>
    %cst_224 = arith.constant 9.99999997E-7 : f32
    %751 = vector.broadcast %cst_224 : f32 to vector<1x128xf32>
    %752 = arith.cmpf ogt, %645, %751 : vector<1x128xf32>
    %753 = arith.select %752, %748, %750 : vector<1x128xi1>, vector<1x128xf32>
    %754 = arith.subf %753, %669 : vector<1x128xf32>
    %755 = arith.addf %629, %754 : vector<1x128xf32>
    %cst_225 = arith.constant 1.250000e-01 : f32
    %756 = vector.broadcast %cst_225 : f32 to vector<4x128xf32>
    %757 = arith.mulf %756, %634 : vector<4x128xf32>
    %758 = arith.addf %632, %757 : vector<4x128xf32>
    %c6 = arith.constant 6 : index
    %c0_226 = arith.constant 0 : index
    %c0_227 = arith.constant 0 : index
    %759 = vector.load %arg2[%c6, %c0_226, %c0_227] : memref<8x4x128xf32, #tpu.memory_space<vmem>>, vector<1x4x128xf32>
    %760 = vector.shape_cast %759 : vector<1x4x128xf32> to vector<4x128xf32>
    %c6_228 = arith.constant 6 : index
    %c0_229 = arith.constant 0 : index
    %761 = vector.load %arg4[%c6_228, %c0_229] : memref<8x128xf32, #tpu.memory_space<vmem>>, vector<1x128xf32>
    %c6_230 = arith.constant 6 : index
    %c0_231 = arith.constant 0 : index
    %762 = vector.load %arg5[%c6_230, %c0_231] : memref<8x128xf32, #tpu.memory_space<vmem>>, vector<1x128xf32>
    %c6_232 = arith.constant 6 : index
    %c0_233 = arith.constant 0 : index
    %763 = vector.load %arg6[%c6_232, %c0_233] : memref<8x128xf32, #tpu.memory_space<vmem>>, vector<1x128xf32>
    %764 = arith.mulf %760, %760 : vector<4x128xf32>
    %765 = vector.extract_strided_slice %764 {offsets = [0, 0], sizes = [1, 128], strides = [1, 1]} : vector<4x128xf32> to vector<1x128xf32>
    %766 = vector.extract_strided_slice %764 {offsets = [1, 0], sizes = [1, 128], strides = [1, 1]} : vector<4x128xf32> to vector<1x128xf32>
    %767 = arith.addf %765, %766 : vector<1x128xf32>
    %768 = vector.extract_strided_slice %764 {offsets = [2, 0], sizes = [1, 128], strides = [1, 1]} : vector<4x128xf32> to vector<1x128xf32>
    %769 = arith.addf %767, %768 : vector<1x128xf32>
    %770 = vector.extract_strided_slice %764 {offsets = [3, 0], sizes = [1, 128], strides = [1, 1]} : vector<4x128xf32> to vector<1x128xf32>
    %771 = arith.addf %769, %770 : vector<1x128xf32>
    %772 = arith.mulf %758, %758 : vector<4x128xf32>
    %773 = vector.extract_strided_slice %772 {offsets = [0, 0], sizes = [1, 128], strides = [1, 1]} : vector<4x128xf32> to vector<1x128xf32>
    %774 = vector.extract_strided_slice %772 {offsets = [1, 0], sizes = [1, 128], strides = [1, 1]} : vector<4x128xf32> to vector<1x128xf32>
    %775 = arith.addf %773, %774 : vector<1x128xf32>
    %776 = vector.extract_strided_slice %772 {offsets = [2, 0], sizes = [1, 128], strides = [1, 1]} : vector<4x128xf32> to vector<1x128xf32>
    %777 = arith.addf %775, %776 : vector<1x128xf32>
    %778 = vector.extract_strided_slice %772 {offsets = [3, 0], sizes = [1, 128], strides = [1, 1]} : vector<4x128xf32> to vector<1x128xf32>
    %779 = arith.addf %777, %778 : vector<1x128xf32>
    %780 = arith.mulf %758, %760 : vector<4x128xf32>
    %781 = vector.extract_strided_slice %780 {offsets = [0, 0], sizes = [1, 128], strides = [1, 1]} : vector<4x128xf32> to vector<1x128xf32>
    %782 = vector.extract_strided_slice %780 {offsets = [1, 0], sizes = [1, 128], strides = [1, 1]} : vector<4x128xf32> to vector<1x128xf32>
    %783 = arith.addf %781, %782 : vector<1x128xf32>
    %784 = vector.extract_strided_slice %780 {offsets = [2, 0], sizes = [1, 128], strides = [1, 1]} : vector<4x128xf32> to vector<1x128xf32>
    %785 = arith.addf %783, %784 : vector<1x128xf32>
    %786 = vector.extract_strided_slice %780 {offsets = [3, 0], sizes = [1, 128], strides = [1, 1]} : vector<4x128xf32> to vector<1x128xf32>
    %787 = arith.addf %785, %786 : vector<1x128xf32>
    %788 = arith.subf %1, %779 : vector<1x128xf32>
    %789 = arith.mulf %761, %788 : vector<1x128xf32>
    %cst_234 = arith.constant 2.000000e+00 : f32
    %790 = vector.broadcast %cst_234 : f32 to vector<1x128xf32>
    %791 = arith.mulf %790, %787 : vector<1x128xf32>
    %792 = arith.mulf %791, %762 : vector<1x128xf32>
    %793 = arith.subf %789, %792 : vector<1x128xf32>
    %794 = arith.mulf %771, %763 : vector<1x128xf32>
    %795 = arith.subf %793, %794 : vector<1x128xf32>
    %796 = arith.subf %1, %779 : vector<1x128xf32>
    %797 = math.exp %796 : vector<1x128xf32>
    %cst_235 = arith.constant 9.99999997E-7 : f32
    %798 = vector.broadcast %cst_235 : f32 to vector<1x128xf32>
    %799 = arith.maximumf %771, %798 : vector<1x128xf32>
    %800 = math.rsqrt %799 : vector<1x128xf32>
    %801 = arith.mulf %799, %800 : vector<1x128xf32>
    %802 = arith.mulf %787, %800 : vector<1x128xf32>
    %cst_236 = arith.constant 1.250000e-01 : f32
    %803 = vector.broadcast %cst_236 : f32 to vector<1x128xf32>
    %804 = arith.mulf %803, %801 : vector<1x128xf32>
    %805 = arith.addf %804, %802 : vector<1x128xf32>
    %cst_237 = arith.constant 0.000000e+00 : f32
    %806 = vector.broadcast %cst_237 : f32 to vector<1x128xf32>
    %807 = arith.cmpf oge, %802, %806 : vector<1x128xf32>
    %cst_238 = arith.constant 1.000000e+00 : f32
    %cst_239 = arith.constant -1.000000e+00 : f32
    %808 = vector.broadcast %cst_238 : f32 to vector<1x128xf32>
    %809 = vector.broadcast %cst_239 : f32 to vector<1x128xf32>
    %810 = arith.select %807, %808, %809 : vector<1x128xi1>, vector<1x128xf32>
    %811 = math.absf %802 : vector<1x128xf32>
    %cst_240 = arith.constant 0.327591091 : f32
    %812 = vector.broadcast %cst_240 : f32 to vector<1x128xf32>
    %813 = arith.mulf %812, %811 : vector<1x128xf32>
    %cst_241 = arith.constant 1.000000e+00 : f32
    %814 = vector.broadcast %cst_241 : f32 to vector<1x128xf32>
    %815 = arith.addf %814, %813 : vector<1x128xf32>
    %cst_242 = arith.constant 1.000000e+00 : f32
    %816 = vector.broadcast %cst_242 : f32 to vector<1x128xf32>
    %817 = arith.divf %816, %815 : vector<1x128xf32>
    %cst_243 = arith.constant 1.06140542 : f32
    %818 = vector.broadcast %cst_243 : f32 to vector<1x128xf32>
    %819 = arith.mulf %817, %818 : vector<1x128xf32>
    %cst_244 = arith.constant -1.45315206 : f32
    %820 = vector.broadcast %cst_244 : f32 to vector<1x128xf32>
    %821 = arith.addf %820, %819 : vector<1x128xf32>
    %822 = arith.mulf %817, %821 : vector<1x128xf32>
    %cst_245 = arith.constant 1.42141378 : f32
    %823 = vector.broadcast %cst_245 : f32 to vector<1x128xf32>
    %824 = arith.addf %823, %822 : vector<1x128xf32>
    %825 = arith.mulf %817, %824 : vector<1x128xf32>
    %cst_246 = arith.constant -0.284496725 : f32
    %826 = vector.broadcast %cst_246 : f32 to vector<1x128xf32>
    %827 = arith.addf %826, %825 : vector<1x128xf32>
    %828 = arith.mulf %817, %827 : vector<1x128xf32>
    %cst_247 = arith.constant 0.254829586 : f32
    %829 = vector.broadcast %cst_247 : f32 to vector<1x128xf32>
    %830 = arith.addf %829, %828 : vector<1x128xf32>
    %831 = arith.mulf %817, %830 : vector<1x128xf32>
    %cst_248 = arith.constant 0.000000e+00 : f32
    %832 = vector.broadcast %cst_248 : f32 to vector<1x128xf32>
    %833 = arith.cmpf oge, %805, %832 : vector<1x128xf32>
    %cst_249 = arith.constant 1.000000e+00 : f32
    %cst_250 = arith.constant -1.000000e+00 : f32
    %834 = vector.broadcast %cst_249 : f32 to vector<1x128xf32>
    %835 = vector.broadcast %cst_250 : f32 to vector<1x128xf32>
    %836 = arith.select %833, %834, %835 : vector<1x128xi1>, vector<1x128xf32>
    %837 = math.absf %805 : vector<1x128xf32>
    %cst_251 = arith.constant 0.327591091 : f32
    %838 = vector.broadcast %cst_251 : f32 to vector<1x128xf32>
    %839 = arith.mulf %838, %837 : vector<1x128xf32>
    %cst_252 = arith.constant 1.000000e+00 : f32
    %840 = vector.broadcast %cst_252 : f32 to vector<1x128xf32>
    %841 = arith.addf %840, %839 : vector<1x128xf32>
    %cst_253 = arith.constant 1.000000e+00 : f32
    %842 = vector.broadcast %cst_253 : f32 to vector<1x128xf32>
    %843 = arith.divf %842, %841 : vector<1x128xf32>
    %cst_254 = arith.constant 1.06140542 : f32
    %844 = vector.broadcast %cst_254 : f32 to vector<1x128xf32>
    %845 = arith.mulf %843, %844 : vector<1x128xf32>
    %cst_255 = arith.constant -1.45315206 : f32
    %846 = vector.broadcast %cst_255 : f32 to vector<1x128xf32>
    %847 = arith.addf %846, %845 : vector<1x128xf32>
    %848 = arith.mulf %843, %847 : vector<1x128xf32>
    %cst_256 = arith.constant 1.42141378 : f32
    %849 = vector.broadcast %cst_256 : f32 to vector<1x128xf32>
    %850 = arith.addf %849, %848 : vector<1x128xf32>
    %851 = arith.mulf %843, %850 : vector<1x128xf32>
    %cst_257 = arith.constant -0.284496725 : f32
    %852 = vector.broadcast %cst_257 : f32 to vector<1x128xf32>
    %853 = arith.addf %852, %851 : vector<1x128xf32>
    %854 = arith.mulf %843, %853 : vector<1x128xf32>
    %cst_258 = arith.constant 0.254829586 : f32
    %855 = vector.broadcast %cst_258 : f32 to vector<1x128xf32>
    %856 = arith.addf %855, %854 : vector<1x128xf32>
    %857 = arith.mulf %843, %856 : vector<1x128xf32>
    %858 = arith.mulf %802, %802 : vector<1x128xf32>
    %859 = math.exp %858 : vector<1x128xf32>
    %860 = arith.subf %836, %810 : vector<1x128xf32>
    %861 = arith.mulf %860, %859 : vector<1x128xf32>
    %862 = arith.mulf %836, %857 : vector<1x128xf32>
    %863 = arith.mulf %802, %802 : vector<1x128xf32>
    %864 = arith.mulf %805, %805 : vector<1x128xf32>
    %865 = arith.subf %863, %864 : vector<1x128xf32>
    %866 = math.exp %865 : vector<1x128xf32>
    %867 = arith.mulf %862, %866 : vector<1x128xf32>
    %868 = arith.subf %861, %867 : vector<1x128xf32>
    %869 = arith.mulf %810, %831 : vector<1x128xf32>
    %870 = arith.addf %868, %869 : vector<1x128xf32>
    %cst_259 = arith.constant 0.886226952 : f32
    %871 = vector.broadcast %cst_259 : f32 to vector<1x128xf32>
    %872 = arith.mulf %871, %800 : vector<1x128xf32>
    %873 = arith.mulf %872, %797 : vector<1x128xf32>
    %874 = arith.mulf %873, %870 : vector<1x128xf32>
    %cst_260 = arith.constant 1.250000e-01 : f32
    %875 = vector.broadcast %cst_260 : f32 to vector<1x128xf32>
    %876 = arith.mulf %875, %797 : vector<1x128xf32>
    %cst_261 = arith.constant 9.99999997E-7 : f32
    %877 = vector.broadcast %cst_261 : f32 to vector<1x128xf32>
    %878 = arith.cmpf ogt, %771, %877 : vector<1x128xf32>
    %879 = arith.select %878, %874, %876 : vector<1x128xi1>, vector<1x128xf32>
    %880 = arith.subf %879, %795 : vector<1x128xf32>
    %881 = arith.addf %755, %880 : vector<1x128xf32>
    %cst_262 = arith.constant 1.250000e-01 : f32
    %882 = vector.broadcast %cst_262 : f32 to vector<4x128xf32>
    %883 = arith.mulf %882, %760 : vector<4x128xf32>
    %884 = arith.addf %758, %883 : vector<4x128xf32>
    %c7 = arith.constant 7 : index
    %c0_263 = arith.constant 0 : index
    %c0_264 = arith.constant 0 : index
    %885 = vector.load %arg2[%c7, %c0_263, %c0_264] : memref<8x4x128xf32, #tpu.memory_space<vmem>>, vector<1x4x128xf32>
    %886 = vector.shape_cast %885 : vector<1x4x128xf32> to vector<4x128xf32>
    %c7_265 = arith.constant 7 : index
    %c0_266 = arith.constant 0 : index
    %887 = vector.load %arg4[%c7_265, %c0_266] : memref<8x128xf32, #tpu.memory_space<vmem>>, vector<1x128xf32>
    %c7_267 = arith.constant 7 : index
    %c0_268 = arith.constant 0 : index
    %888 = vector.load %arg5[%c7_267, %c0_268] : memref<8x128xf32, #tpu.memory_space<vmem>>, vector<1x128xf32>
    %c7_269 = arith.constant 7 : index
    %c0_270 = arith.constant 0 : index
    %889 = vector.load %arg6[%c7_269, %c0_270] : memref<8x128xf32, #tpu.memory_space<vmem>>, vector<1x128xf32>
    %890 = arith.mulf %886, %886 : vector<4x128xf32>
    %891 = vector.extract_strided_slice %890 {offsets = [0, 0], sizes = [1, 128], strides = [1, 1]} : vector<4x128xf32> to vector<1x128xf32>
    %892 = vector.extract_strided_slice %890 {offsets = [1, 0], sizes = [1, 128], strides = [1, 1]} : vector<4x128xf32> to vector<1x128xf32>
    %893 = arith.addf %891, %892 : vector<1x128xf32>
    %894 = vector.extract_strided_slice %890 {offsets = [2, 0], sizes = [1, 128], strides = [1, 1]} : vector<4x128xf32> to vector<1x128xf32>
    %895 = arith.addf %893, %894 : vector<1x128xf32>
    %896 = vector.extract_strided_slice %890 {offsets = [3, 0], sizes = [1, 128], strides = [1, 1]} : vector<4x128xf32> to vector<1x128xf32>
    %897 = arith.addf %895, %896 : vector<1x128xf32>
    %898 = arith.mulf %884, %884 : vector<4x128xf32>
    %899 = vector.extract_strided_slice %898 {offsets = [0, 0], sizes = [1, 128], strides = [1, 1]} : vector<4x128xf32> to vector<1x128xf32>
    %900 = vector.extract_strided_slice %898 {offsets = [1, 0], sizes = [1, 128], strides = [1, 1]} : vector<4x128xf32> to vector<1x128xf32>
    %901 = arith.addf %899, %900 : vector<1x128xf32>
    %902 = vector.extract_strided_slice %898 {offsets = [2, 0], sizes = [1, 128], strides = [1, 1]} : vector<4x128xf32> to vector<1x128xf32>
    %903 = arith.addf %901, %902 : vector<1x128xf32>
    %904 = vector.extract_strided_slice %898 {offsets = [3, 0], sizes = [1, 128], strides = [1, 1]} : vector<4x128xf32> to vector<1x128xf32>
    %905 = arith.addf %903, %904 : vector<1x128xf32>
    %906 = arith.mulf %884, %886 : vector<4x128xf32>
    %907 = vector.extract_strided_slice %906 {offsets = [0, 0], sizes = [1, 128], strides = [1, 1]} : vector<4x128xf32> to vector<1x128xf32>
    %908 = vector.extract_strided_slice %906 {offsets = [1, 0], sizes = [1, 128], strides = [1, 1]} : vector<4x128xf32> to vector<1x128xf32>
    %909 = arith.addf %907, %908 : vector<1x128xf32>
    %910 = vector.extract_strided_slice %906 {offsets = [2, 0], sizes = [1, 128], strides = [1, 1]} : vector<4x128xf32> to vector<1x128xf32>
    %911 = arith.addf %909, %910 : vector<1x128xf32>
    %912 = vector.extract_strided_slice %906 {offsets = [3, 0], sizes = [1, 128], strides = [1, 1]} : vector<4x128xf32> to vector<1x128xf32>
    %913 = arith.addf %911, %912 : vector<1x128xf32>
    %914 = arith.subf %1, %905 : vector<1x128xf32>
    %915 = arith.mulf %887, %914 : vector<1x128xf32>
    %cst_271 = arith.constant 2.000000e+00 : f32
    %916 = vector.broadcast %cst_271 : f32 to vector<1x128xf32>
    %917 = arith.mulf %916, %913 : vector<1x128xf32>
    %918 = arith.mulf %917, %888 : vector<1x128xf32>
    %919 = arith.subf %915, %918 : vector<1x128xf32>
    %920 = arith.mulf %897, %889 : vector<1x128xf32>
    %921 = arith.subf %919, %920 : vector<1x128xf32>
    %922 = arith.subf %1, %905 : vector<1x128xf32>
    %923 = math.exp %922 : vector<1x128xf32>
    %cst_272 = arith.constant 9.99999997E-7 : f32
    %924 = vector.broadcast %cst_272 : f32 to vector<1x128xf32>
    %925 = arith.maximumf %897, %924 : vector<1x128xf32>
    %926 = math.rsqrt %925 : vector<1x128xf32>
    %927 = arith.mulf %925, %926 : vector<1x128xf32>
    %928 = arith.mulf %913, %926 : vector<1x128xf32>
    %cst_273 = arith.constant 1.250000e-01 : f32
    %929 = vector.broadcast %cst_273 : f32 to vector<1x128xf32>
    %930 = arith.mulf %929, %927 : vector<1x128xf32>
    %931 = arith.addf %930, %928 : vector<1x128xf32>
    %cst_274 = arith.constant 0.000000e+00 : f32
    %932 = vector.broadcast %cst_274 : f32 to vector<1x128xf32>
    %933 = arith.cmpf oge, %928, %932 : vector<1x128xf32>
    %cst_275 = arith.constant 1.000000e+00 : f32
    %cst_276 = arith.constant -1.000000e+00 : f32
    %934 = vector.broadcast %cst_275 : f32 to vector<1x128xf32>
    %935 = vector.broadcast %cst_276 : f32 to vector<1x128xf32>
    %936 = arith.select %933, %934, %935 : vector<1x128xi1>, vector<1x128xf32>
    %937 = math.absf %928 : vector<1x128xf32>
    %cst_277 = arith.constant 0.327591091 : f32
    %938 = vector.broadcast %cst_277 : f32 to vector<1x128xf32>
    %939 = arith.mulf %938, %937 : vector<1x128xf32>
    %cst_278 = arith.constant 1.000000e+00 : f32
    %940 = vector.broadcast %cst_278 : f32 to vector<1x128xf32>
    %941 = arith.addf %940, %939 : vector<1x128xf32>
    %cst_279 = arith.constant 1.000000e+00 : f32
    %942 = vector.broadcast %cst_279 : f32 to vector<1x128xf32>
    %943 = arith.divf %942, %941 : vector<1x128xf32>
    %cst_280 = arith.constant 1.06140542 : f32
    %944 = vector.broadcast %cst_280 : f32 to vector<1x128xf32>
    %945 = arith.mulf %943, %944 : vector<1x128xf32>
    %cst_281 = arith.constant -1.45315206 : f32
    %946 = vector.broadcast %cst_281 : f32 to vector<1x128xf32>
    %947 = arith.addf %946, %945 : vector<1x128xf32>
    %948 = arith.mulf %943, %947 : vector<1x128xf32>
    %cst_282 = arith.constant 1.42141378 : f32
    %949 = vector.broadcast %cst_282 : f32 to vector<1x128xf32>
    %950 = arith.addf %949, %948 : vector<1x128xf32>
    %951 = arith.mulf %943, %950 : vector<1x128xf32>
    %cst_283 = arith.constant -0.284496725 : f32
    %952 = vector.broadcast %cst_283 : f32 to vector<1x128xf32>
    %953 = arith.addf %952, %951 : vector<1x128xf32>
    %954 = arith.mulf %943, %953 : vector<1x128xf32>
    %cst_284 = arith.constant 0.254829586 : f32
    %955 = vector.broadcast %cst_284 : f32 to vector<1x128xf32>
    %956 = arith.addf %955, %954 : vector<1x128xf32>
    %957 = arith.mulf %943, %956 : vector<1x128xf32>
    %cst_285 = arith.constant 0.000000e+00 : f32
    %958 = vector.broadcast %cst_285 : f32 to vector<1x128xf32>
    %959 = arith.cmpf oge, %931, %958 : vector<1x128xf32>
    %cst_286 = arith.constant 1.000000e+00 : f32
    %cst_287 = arith.constant -1.000000e+00 : f32
    %960 = vector.broadcast %cst_286 : f32 to vector<1x128xf32>
    %961 = vector.broadcast %cst_287 : f32 to vector<1x128xf32>
    %962 = arith.select %959, %960, %961 : vector<1x128xi1>, vector<1x128xf32>
    %963 = math.absf %931 : vector<1x128xf32>
    %cst_288 = arith.constant 0.327591091 : f32
    %964 = vector.broadcast %cst_288 : f32 to vector<1x128xf32>
    %965 = arith.mulf %964, %963 : vector<1x128xf32>
    %cst_289 = arith.constant 1.000000e+00 : f32
    %966 = vector.broadcast %cst_289 : f32 to vector<1x128xf32>
    %967 = arith.addf %966, %965 : vector<1x128xf32>
    %cst_290 = arith.constant 1.000000e+00 : f32
    %968 = vector.broadcast %cst_290 : f32 to vector<1x128xf32>
    %969 = arith.divf %968, %967 : vector<1x128xf32>
    %cst_291 = arith.constant 1.06140542 : f32
    %970 = vector.broadcast %cst_291 : f32 to vector<1x128xf32>
    %971 = arith.mulf %969, %970 : vector<1x128xf32>
    %cst_292 = arith.constant -1.45315206 : f32
    %972 = vector.broadcast %cst_292 : f32 to vector<1x128xf32>
    %973 = arith.addf %972, %971 : vector<1x128xf32>
    %974 = arith.mulf %969, %973 : vector<1x128xf32>
    %cst_293 = arith.constant 1.42141378 : f32
    %975 = vector.broadcast %cst_293 : f32 to vector<1x128xf32>
    %976 = arith.addf %975, %974 : vector<1x128xf32>
    %977 = arith.mulf %969, %976 : vector<1x128xf32>
    %cst_294 = arith.constant -0.284496725 : f32
    %978 = vector.broadcast %cst_294 : f32 to vector<1x128xf32>
    %979 = arith.addf %978, %977 : vector<1x128xf32>
    %980 = arith.mulf %969, %979 : vector<1x128xf32>
    %cst_295 = arith.constant 0.254829586 : f32
    %981 = vector.broadcast %cst_295 : f32 to vector<1x128xf32>
    %982 = arith.addf %981, %980 : vector<1x128xf32>
    %983 = arith.mulf %969, %982 : vector<1x128xf32>
    %984 = arith.mulf %928, %928 : vector<1x128xf32>
    %985 = math.exp %984 : vector<1x128xf32>
    %986 = arith.subf %962, %936 : vector<1x128xf32>
    %987 = arith.mulf %986, %985 : vector<1x128xf32>
    %988 = arith.mulf %962, %983 : vector<1x128xf32>
    %989 = arith.mulf %928, %928 : vector<1x128xf32>
    %990 = arith.mulf %931, %931 : vector<1x128xf32>
    %991 = arith.subf %989, %990 : vector<1x128xf32>
    %992 = math.exp %991 : vector<1x128xf32>
    %993 = arith.mulf %988, %992 : vector<1x128xf32>
    %994 = arith.subf %987, %993 : vector<1x128xf32>
    %995 = arith.mulf %936, %957 : vector<1x128xf32>
    %996 = arith.addf %994, %995 : vector<1x128xf32>
    %cst_296 = arith.constant 0.886226952 : f32
    %997 = vector.broadcast %cst_296 : f32 to vector<1x128xf32>
    %998 = arith.mulf %997, %926 : vector<1x128xf32>
    %999 = arith.mulf %998, %923 : vector<1x128xf32>
    %1000 = arith.mulf %999, %996 : vector<1x128xf32>
    %cst_297 = arith.constant 1.250000e-01 : f32
    %1001 = vector.broadcast %cst_297 : f32 to vector<1x128xf32>
    %1002 = arith.mulf %1001, %923 : vector<1x128xf32>
    %cst_298 = arith.constant 9.99999997E-7 : f32
    %1003 = vector.broadcast %cst_298 : f32 to vector<1x128xf32>
    %1004 = arith.cmpf ogt, %897, %1003 : vector<1x128xf32>
    %1005 = arith.select %1004, %1000, %1002 : vector<1x128xi1>, vector<1x128xf32>
    %1006 = arith.subf %1005, %921 : vector<1x128xf32>
    %1007 = arith.addf %881, %1006 : vector<1x128xf32>
    %c0_299 = arith.constant 0 : index
    %c0_300 = arith.constant 0 : index
    %1008 = vector.load %arg7[%c0_299, %c0_300] : memref<1x128xf32, #tpu.memory_space<vmem>>, vector<1x128xf32>
    tpu.vector_store %arg7[%c0_299, %c0_300], %1007 {strides = array<i32>} : memref<1x128xf32, #tpu.memory_space<vmem>>, vector<1x128xf32>,
    return
  }
  func.func @transform_0(%arg0: i32) -> (i32, i32) {
    %c0_i32 = arith.constant 0 : i32
    %c0_i32_0 = arith.constant 0 : i32
    return %c0_i32, %arg0 : i32, i32
  }
  func.func @transform_1(%arg0: i32) -> (i32, i32, i32) {
    %c0_i32 = arith.constant 0 : i32
    %c0_i32_0 = arith.constant 0 : i32
    %c0_i32_1 = arith.constant 0 : i32
    return %c0_i32, %c0_i32_0, %arg0 : i32, i32, i32
  }
  func.func @transform_2(%arg0: i32) -> (i32, i32) {
    %c0_i32 = arith.constant 0 : i32
    %c0_i32_0 = arith.constant 0 : i32
    return %c0_i32, %arg0 : i32, i32
  }
  func.func @transform_3(%arg0: i32) -> (i32, i32) {
    %c0_i32 = arith.constant 0 : i32
    %c0_i32_0 = arith.constant 0 : i32
    return %c0_i32, %arg0 : i32, i32
  }
  func.func @transform_4(%arg0: i32) -> (i32, i32) {
    %c0_i32 = arith.constant 0 : i32
    %c0_i32_0 = arith.constant 0 : i32
    return %c0_i32, %arg0 : i32, i32
  }
  func.func @transform_5(%arg0: i32) -> (i32, i32) {
    %c0_i32 = arith.constant 0 : i32
    %c0_i32_0 = arith.constant 0 : i32
    return %c0_i32, %arg0 : i32, i32
  }
  func.func @transform_6(%arg0: i32) -> (i32, i32) {
    %c0_i32 = arith.constant 0 : i32
    %c0_i32_0 = arith.constant 0 : i32
    return %c0_i32, %arg0 : i32, i32
  }
}

</mosaic_0001>

<llo_original>
// kernel: tpu_custom_call.1
$region0: #{tpu_custom_call.1}
  #allocation0 [shape = 'u32[]', space=smem, size = 0x4, offset = 0x4, fixed_abs, tag = 'smem constant byte address 0x4 - core index']
  #allocation1 [shape = 'u32[72,128]{1,0:T(1,128)}', space=vmem, size = 0x9000, scoped, tag = 'internal scratch']
  %s0 = inlined_call_operand.hbm [shape: f32[4,128], index: 0, kind: input, shape index: {}]
  %s1 = inlined_call_operand.hbm [shape: f32[8,4,128], index: 1, kind: input, shape index: {}]
  %s2 = inlined_call_operand.vmem [shape: f32[1,128], index: 2, kind: input, shape index: {}]
  %s3 = inlined_call_operand.hbm [shape: f32[8,128], index: 3, kind: input, shape index: {}]
  %s4 = inlined_call_operand.hbm [shape: f32[8,128], index: 4, kind: input, shape index: {}]
  %s5 = inlined_call_operand.hbm [shape: f32[8,128], index: 5, kind: input, shape index: {}]
  %s6 = inlined_call_operand.hbm [shape: f32[1,128], index: 6, kind: output, shape index: {}]
  %s7 = sld [smem:[#allocation0]]
  $region54: #{tpu_custom_call.1} parent=0
    _
  %s9 = ssub.s32 1, %s7
  %s10 = scalar_select 0, %s9, %s7
  $region1: #{tpu_custom_call.1} parent=0
    #allocation2 [shape = 'u8[2048]{0}', space=vmem, size = 0x800, scoped, tag = 'input window, operand 0, single buffered']
    #allocation3 [shape = 's32[1]{0}', space=sflag, size = 0x4, scoped, tag = 'scoped memory for tpu_custom_call.1']
    #allocation4 [shape = 's32[1]{0}', space=sflag, size = 0x4, scoped, tag = 'scoped memory for tpu_custom_call.1']
    #allocation5 [shape = 'u8[16384]{0}', space=vmem, size = 0x4000, scoped, tag = 'input window, operand 1, single buffered']
    #allocation6 [shape = 's32[1]{0}', space=sflag, size = 0x4, scoped, tag = 'scoped memory for tpu_custom_call.1']
    #allocation7 [shape = 'u8[4096]{0}', space=vmem, size = 0x1000, scoped, tag = 'input window, operand 3, single buffered']
    #allocation8 [shape = 'u8[4096]{0}', space=vmem, size = 0x1000, scoped, tag = 'input window, operand 4, single buffered']
    #allocation9 [shape = 's32[1]{0}', space=sflag, size = 0x4, scoped, tag = 'scoped memory for tpu_custom_call.1']
    #allocation10 [shape = 'u8[4096]{0}', space=vmem, size = 0x1000, scoped, tag = 'input window, operand 5, single buffered']
    #allocation11 [shape = 'u8[512]{0}', space=vmem, size = 0x400, scoped, tag = 'output window, operand 0, single buffered']
    %11 = vsyncpa [#allocation3], 0
    %12 = vsyncpa [#allocation6], 0
    %13 = vsyncpa [#allocation9], 0
    %14 = vsyncpa [#allocation4], 0
    // Predicated region
    $region2: #{tpu_custom_call.1} parent=1 // pred_check
      _
    $region3: #{tpu_custom_call.1} parent=1 // pred_check_branch
      %16 = sbr.rel (0) target = $region5
    $region4: #{tpu_custom_call.1} parent=1 // pred_region
      %18 = vsyncadd [#allocation3], 0
      %s20 = sshll.u32 %s0, 4
      %s21 = int_to_ptr.hbm [resolvable:$true] %s20
      %s22 = sshll.u32 [#allocation2], 4
      %s23 = int_to_ptr.vmem [resolvable:$true] %s22
      %25 = dma.hbm_to_vmem [thread:$0]  %s21, 64, %s23, [#allocation3]
    $region5: #{tpu_custom_call.1} parent=1 // pred_fallthru
      _
    // Predicated region
    $region6: #{tpu_custom_call.1} parent=1 // pred_check
      _
    $region7: #{tpu_custom_call.1} parent=1 // pred_check_branch
      %27 = sbr.rel (0) target = $region9
    $region8: #{tpu_custom_call.1} parent=1 // pred_region
      %29 = vsyncadd [#allocation6], 0
      %s30 = sshll.u32 %s1, 4
      %s31 = int_to_ptr.hbm [resolvable:$true] %s30
      %s32 = sshll.u32 [#allocation5], 4
      %s33 = int_to_ptr.vmem [resolvable:$true] %s32
      %38 = dma.hbm_to_vmem [thread:$0]  %s31, 512, %s33, [#allocation6], 64, 64, 4
    $region9: #{tpu_custom_call.1} parent=1 // pred_fallthru
      _
    // Predicated region
    $region10: #{tpu_custom_call.1} parent=1 // pred_check
      _
    $region11: #{tpu_custom_call.1} parent=1 // pred_check_branch
      %40 = sbr.rel (0) target = $region13
    $region12: #{tpu_custom_call.1} parent=1 // pred_region
      _
    $region13: #{tpu_custom_call.1} parent=1 // pred_fallthru
      _
    // Predicated region
    $region14: #{tpu_custom_call.1} parent=1 // pred_check
      _
    $region15: #{tpu_custom_call.1} parent=1 // pred_check_branch
      %42 = sbr.rel (0) target = $region17
    $region16: #{tpu_custom_call.1} parent=1 // pred_region
      %44 = vsyncadd [#allocation6], 0
      %s46 = sshll.u32 %s3, 4
      %s47 = int_to_ptr.hbm [resolvable:$true] %s46
      %s48 = sshll.u32 [#allocation7], 4
      %s49 = int_to_ptr.vmem [resolvable:$true] %s48
      %51 = dma.hbm_to_vmem [thread:$0]  %s47, 128, %s49, [#allocation6]
    $region17: #{tpu_custom_call.1} parent=1 // pred_fallthru
      _
    // Predicated region
    $region18: #{tpu_custom_call.1} parent=1 // pred_check
      _
    $region19: #{tpu_custom_call.1} parent=1 // pred_check_branch
      %53 = sbr.rel (0) target = $region21
    $region20: #{tpu_custom_call.1} parent=1 // pred_region
      %55 = vsyncadd [#allocation9], 0
      %s57 = sshll.u32 %s4, 4
      %s58 = int_to_ptr.hbm [resolvable:$true] %s57
      %s59 = sshll.u32 [#allocation8], 4
      %s60 = int_to_ptr.vmem [resolvable:$true] %s59
      %62 = dma.hbm_to_vmem [thread:$0]  %s58, 128, %s60, [#allocation9]
    $region21: #{tpu_custom_call.1} parent=1 // pred_fallthru
      _
    // Predicated region
    $region22: #{tpu_custom_call.1} parent=1 // pred_check
      _
    $region23: #{tpu_custom_call.1} parent=1 // pred_check_branch
      %64 = sbr.rel (0) target = $region25
    $region24: #{tpu_custom_call.1} parent=1 // pred_region
      %66 = vsyncadd [#allocation9], 0
      %s68 = sshll.u32 %s5, 4
      %s69 = int_to_ptr.hbm [resolvable:$true] %s68
      %s70 = sshll.u32 [#allocation10], 4
      %s71 = int_to_ptr.vmem [resolvable:$true] %s70
      %73 = dma.hbm_to_vmem [thread:$0]  %s69, 128, %s71, [#allocation9]
    $region25: #{tpu_custom_call.1} parent=1 // pred_fallthru
      _
    // Predicated region
    $region26: #{tpu_custom_call.1} parent=1 // pred_check
      _
    $region27: #{tpu_custom_call.1} parent=1 // pred_check_branch
      %75 = sbr.rel (0) target = $region29
    $region28: #{tpu_custom_call.1} parent=1 // pred_region
      %77 = dma.done [#allocation3], 64
    $region29: #{tpu_custom_call.1} parent=1 // pred_fallthru
      _
    // Predicated region
    $region30: #{tpu_custom_call.1} parent=1 // pred_check
      _
    $region31: #{tpu_custom_call.1} parent=1 // pred_check_branch
      %79 = sbr.rel (0) target = $region33
    $region32: #{tpu_custom_call.1} parent=1 // pred_region
      %81 = dma.done [#allocation6], 512
    $region33: #{tpu_custom_call.1} parent=1 // pred_fallthru
      _
    // Predicated region
    $region34: #{tpu_custom_call.1} parent=1 // pred_check
      _
    $region35: #{tpu_custom_call.1} parent=1 // pred_check_branch
      %83 = sbr.rel (0) target = $region37
    $region36: #{tpu_custom_call.1} parent=1 // pred_region
      %85 = dma.done [#allocation6], 128
    $region37: #{tpu_custom_call.1} parent=1 // pred_fallthru
      _
    // Predicated region
    $region38: #{tpu_custom_call.1} parent=1 // pred_check
      _
    $region39: #{tpu_custom_call.1} parent=1 // pred_check_branch
      %87 = sbr.rel (0) target = $region41
    $region40: #{tpu_custom_call.1} parent=1 // pred_region
      %89 = dma.done [#allocation9], 128
    $region41: #{tpu_custom_call.1} parent=1 // pred_fallthru
      _
    // Predicated region
    $region42: #{tpu_custom_call.1} parent=1 // pred_check
      _
    $region43: #{tpu_custom_call.1} parent=1 // pred_check_branch
      %91 = sbr.rel (0) target = $region45
    $region44: #{tpu_custom_call.1} parent=1 // pred_region
      %93 = dma.done [#allocation9], 128
    $region45: #{tpu_custom_call.1} parent=1 // pred_fallthru
      _
    %v94 = vld [vmem:[#allocation2] sm:$0xf]
    %v95 = vld [vmem:[%s2] sm:$0x1]
    %v96 = vld [vmem:[#allocation5] sm:$0xf]
    %v97 = vld [vmem:[#allocation7] sm:$0x1]
    %v98 = vld [vmem:[#allocation8] sm:$0x1]
    %v99 = vld [vmem:[#allocation10] sm:$0x1]
    %v100 = vmul.f32 %v96, %v96
    %v102 = vrot.slane %v100, 1
    %v104 = vadd.f32 %v100, %v102
    %v105 = vrot.slane %v100, 2
    %v107 = vadd.f32 %v104, %v105
    %v108 = vrot.slane %v100, 3
    %v110 = vadd.f32 %v107, %v108
    %v111 = vmul.f32 %v94, %v94
    %v113 = vrot.slane %v111, 1
    %v115 = vadd.f32 %v111, %v113
    %v116 = vrot.slane %v111, 2
    %v118 = vadd.f32 %v115, %v116
    %v119 = vrot.slane %v111, 3
    %v121 = vadd.f32 %v118, %v119
    %v122 = vmul.f32 %v94, %v96
    %v124 = vrot.slane %v122, 1
    %v126 = vadd.f32 %v122, %v124
    %v127 = vrot.slane %v122, 2
    %v129 = vadd.f32 %v126, %v127
    %v130 = vrot.slane %v122, 3
    %v132 = vadd.f32 %v129, %v130
    %v133 = vsub.f32 %v95, %v121
    %v134 = vmul.f32 %v97, %v133
    %v135 = vmul.f32 %v132, 2.0
    %v136 = vmul.f32 %v135, %v98
    %v137 = vsub.f32 %v134, %v136
    %v138 = vmul.f32 %v110, %v99
    %v139 = vsub.f32 %v137, %v138
    %v140 = vmul.f32 %v133, 1.442695
    %v141 = vpow.pop %v140
    %v142 = vmax.f32 %v110, 1e-06
    %v143 = vrsqrt.pop %v142
    %v144 = vmul.f32 %v143, %v142
    %v145 = vmul.f32 %v144, %v143
    %v146 = vmul.f32 0.5, %v145
    %v147 = vsub.f32 1.5, %v146
    %v148 = vmul.f32 %v143, %v147
    %vm149 = vweird.f32 %v142
    %vm150 = vweird.f32 %v143
    %vm151 = vmor %vm149, %vm150
    %v152 = vsel %vm151, %v143, %v148
    %v153 = vmul.f32 %v142, %v152
    %v154 = vmul.f32 %v132, %v152
    %v155 = vmul.f32 %v153, 0.125
    %v156 = vadd.f32 %v155, %v154
    %vm157 = vcmp.ge.f32.partialorder %v154, 0.0
    %v158 = vsel %vm157, 1.0, -1.0
    %v159 = vand.u32 2147483647, %v154
    %v160 = vmul.f32 %v159, 0.3275911
    %v161 = vadd.f32 %v160, 1.0
    %v162 = vrcp.pop %v161
    %v163 = vmul.f32 %v161, %v162
    %v164 = vsub.f32 1.0, %v163
    %v165 = vmul.f32 %v162, %v164
    %v166 = vadd.f32 %v162, %v165
    %vm167 = vweird.f32 %v161
    %vm168 = vweird.f32 %v162
    %vm169 = vmor %vm167, %vm168
    %v170 = vsel %vm169, %v162, %v166
    %v171 = vand.u32 2147483647, %v161
    %vm172 = vcmp.eq.f32.partialorder %v171, 8.507059e+37
    %v173 = vand.u32 %v161, 2147483648
    %v174 = vor.u32 1.1754944e-38, %v173
    %v175 = vsel %vm172, %v174, %v170
    %v176 = vmul.f32 1.0, %v175
    %v177 = vmul.f32 %v176, 1.0614054
    %v178 = vadd.f32 %v177, -1.4531521
    %v179 = vmul.f32 %v176, %v178
    %v180 = vadd.f32 %v179, 1.4214138
    %v181 = vmul.f32 %v176, %v180
    %v182 = vadd.f32 %v181, -0.28449672
    %v183 = vmul.f32 %v176, %v182
    %v184 = vadd.f32 %v183, 0.2548296
    %v185 = vmul.f32 %v176, %v184
    %vm186 = vcmp.ge.f32.partialorder %v156, 0.0
    %v187 = vsel %vm186, 1.0, -1.0
    %v188 = vand.u32 2147483647, %v156
    %v189 = vmul.f32 %v188, 0.3275911
    %v190 = vadd.f32 %v189, 1.0
    %v191 = vrcp.pop %v190
    %v192 = vmul.f32 %v190, %v191
    %v193 = vsub.f32 1.0, %v192
    %v194 = vmul.f32 %v191, %v193
    %v195 = vadd.f32 %v191, %v194
    %vm196 = vweird.f32 %v190
    %vm197 = vweird.f32 %v191
    %vm198 = vmor %vm196, %vm197
    %v199 = vsel %vm198, %v191, %v195
    %v200 = vand.u32 2147483647, %v190
    %vm201 = vcmp.eq.f32.partialorder %v200, 8.507059e+37
    %v202 = vand.u32 %v190, 2147483648
    %v203 = vor.u32 1.1754944e-38, %v202
    %v204 = vsel %vm201, %v203, %v199
    %v205 = vmul.f32 1.0, %v204
    %v206 = vmul.f32 %v205, 1.0614054
    %v207 = vadd.f32 %v206, -1.4531521
    %v208 = vmul.f32 %v205, %v207
    %v209 = vadd.f32 %v208, 1.4214138
    %v210 = vmul.f32 %v205, %v209
    %v211 = vadd.f32 %v210, -0.28449672
    %v212 = vmul.f32 %v205, %v211
    %v213 = vadd.f32 %v212, 0.2548296
    %v214 = vmul.f32 %v205, %v213
    %v215 = vmul.f32 %v154, %v154
    %v216 = vmul.f32 %v215, 1.442695
    %v217 = vpow.pop %v216
    %v218 = vsub.f32 %v187, %v158
    %v219 = vmul.f32 %v218, %v217
    %v220 = vmul.f32 %v187, %v214
    %v221 = vmul.f32 %v156, %v156
    %v222 = vsub.f32 %v215, %v221
    %v223 = vmul.f32 %v222, 1.442695
    %v224 = vpow.pop %v223
    %v225 = vmul.f32 %v220, %v224
    %v226 = vsub.f32 %v219, %v225
    %v227 = vmul.f32 %v158, %v185
    %v228 = vadd.f32 %v226, %v227
    %v229 = vmul.f32 %v152, 0.88622695
    %v230 = vmul.f32 %v229, %v141
    %v231 = vmul.f32 %v230, %v228
    %v232 = vmul.f32 %v141, 0.125
    %vm233 = vcmp.gt.f32.partialorder %v110, 1e-06
    %v234 = vsel %vm233, %v231, %v232
    %v235 = vsub.f32 %v234, %v139
    %v236 = vadd.f32 %v235, 0.0
    %v237 = vmul.f32 %v96, 0.125
    %v238 = vadd.f32 %v94, %v237
    %s239 = scalar_lea.vmem [#allocation5], 4
    %v240 = vld [vmem:[%s239] sm:$0xf]
    %v241 = vld [vmem:[#allocation7 + $0x1] sm:$0x1]
    %v242 = vld [vmem:[#allocation8 + $0x1] sm:$0x1]
    %v243 = vld [vmem:[#allocation10 + $0x1] sm:$0x1]
    %v244 = vmul.f32 %v240, %v240
    %v246 = vrot.slane %v244, 1
    %v248 = vadd.f32 %v244, %v246
    %v249 = vrot.slane %v244, 2
    %v251 = vadd.f32 %v248, %v249
    %v252 = vrot.slane %v244, 3
    %v254 = vadd.f32 %v251, %v252
    %v255 = vmul.f32 %v238, %v238
    %v257 = vrot.slane %v255, 1
    %v259 = vadd.f32 %v255, %v257
    %v260 = vrot.slane %v255, 2
    %v262 = vadd.f32 %v259, %v260
    %v263 = vrot.slane %v255, 3
    %v265 = vadd.f32 %v262, %v263
    %v266 = vmul.f32 %v238, %v240
    %v268 = vrot.slane %v266, 1
    %v270 = vadd.f32 %v266, %v268
    %v271 = vrot.slane %v266, 2
    %v273 = vadd.f32 %v270, %v271
    %v274 = vrot.slane %v266, 3
    %v276 = vadd.f32 %v273, %v274
    %v277 = vsub.f32 %v95, %v265
    %v278 = vmul.f32 %v241, %v277
    %v279 = vmul.f32 %v276, 2.0
    %v280 = vmul.f32 %v279, %v242
    %v281 = vsub.f32 %v278, %v280
    %v282 = vmul.f32 %v254, %v243
    %v283 = vsub.f32 %v281, %v282
    %v284 = vmul.f32 %v277, 1.442695
    %v285 = vpow.pop %v284
    %v286 = vmax.f32 %v254, 1e-06
    %v287 = vrsqrt.pop %v286
    %v288 = vmul.f32 %v287, %v286
    %v289 = vmul.f32 %v288, %v287
    %v290 = vmul.f32 0.5, %v289
    %v291 = vsub.f32 1.5, %v290
    %v292 = vmul.f32 %v287, %v291
    %vm293 = vweird.f32 %v286
    %vm294 = vweird.f32 %v287
    %vm295 = vmor %vm293, %vm294
    %v296 = vsel %vm295, %v287, %v292
    %v297 = vmul.f32 %v286, %v296
    %v298 = vmul.f32 %v276, %v296
    %v299 = vmul.f32 %v297, 0.125
    %v300 = vadd.f32 %v299, %v298
    %vm301 = vcmp.ge.f32.partialorder %v298, 0.0
    %v302 = vsel %vm301, 1.0, -1.0
    %v303 = vand.u32 2147483647, %v298
    %v304 = vmul.f32 %v303, 0.3275911
    %v305 = vadd.f32 %v304, 1.0
    %v306 = vrcp.pop %v305
    %v307 = vmul.f32 %v305, %v306
    %v308 = vsub.f32 1.0, %v307
    %v309 = vmul.f32 %v306, %v308
    %v310 = vadd.f32 %v306, %v309
    %vm311 = vweird.f32 %v305
    %vm312 = vweird.f32 %v306
    %vm313 = vmor %vm311, %vm312
    %v314 = vsel %vm313, %v306, %v310
    %v315 = vand.u32 2147483647, %v305
    %vm316 = vcmp.eq.f32.partialorder %v315, 8.507059e+37
    %v317 = vand.u32 %v305, 2147483648
    %v318 = vor.u32 1.1754944e-38, %v317
    %v319 = vsel %vm316, %v318, %v314
    %v320 = vmul.f32 1.0, %v319
    %v321 = vmul.f32 %v320, 1.0614054
    %v322 = vadd.f32 %v321, -1.4531521
    %v323 = vmul.f32 %v320, %v322
    %v324 = vadd.f32 %v323, 1.4214138
    %v325 = vmul.f32 %v320, %v324
    %v326 = vadd.f32 %v325, -0.28449672
    %v327 = vmul.f32 %v320, %v326
    %v328 = vadd.f32 %v327, 0.2548296
    %v329 = vmul.f32 %v320, %v328
    %vm330 = vcmp.ge.f32.partialorder %v300, 0.0
    %v331 = vsel %vm330, 1.0, -1.0
    %v332 = vand.u32 2147483647, %v300
    %v333 = vmul.f32 %v332, 0.3275911
    %v334 = vadd.f32 %v333, 1.0
    %v335 = vrcp.pop %v334
    %v336 = vmul.f32 %v334, %v335
    %v337 = vsub.f32 1.0, %v336
    %v338 = vmul.f32 %v335, %v337
    %v339 = vadd.f32 %v335, %v338
    %vm340 = vweird.f32 %v334
    %vm341 = vweird.f32 %v335
    %vm342 = vmor %vm340, %vm341
    %v343 = vsel %vm342, %v335, %v339
    %v344 = vand.u32 2147483647, %v334
    %vm345 = vcmp.eq.f32.partialorder %v344, 8.507059e+37
    %v346 = vand.u32 %v334, 2147483648
    %v347 = vor.u32 1.1754944e-38, %v346
    %v348 = vsel %vm345, %v347, %v343
    %v349 = vmul.f32 1.0, %v348
    %v350 = vmul.f32 %v349, 1.0614054
    %v351 = vadd.f32 %v350, -1.4531521
    %v352 = vmul.f32 %v349, %v351
    %v353 = vadd.f32 %v352, 1.4214138
    %v354 = vmul.f32 %v349, %v353
    %v355 = vadd.f32 %v354, -0.28449672
    %v356 = vmul.f32 %v349, %v355
    %v357 = vadd.f32 %v356, 0.2548296
    %v358 = vmul.f32 %v349, %v357
    %v359 = vmul.f32 %v298, %v298
    %v360 = vmul.f32 %v359, 1.442695
    %v361 = vpow.pop %v360
    %v362 = vsub.f32 %v331, %v302
    %v363 = vmul.f32 %v362, %v361
    %v364 = vmul.f32 %v331, %v358
    %v365 = vmul.f32 %v300, %v300
    %v366 = vsub.f32 %v359, %v365
    %v367 = vmul.f32 %v366, 1.442695
    %v368 = vpow.pop %v367
    %v369 = vmul.f32 %v364, %v368
    %v370 = vsub.f32 %v363, %v369
    %v371 = vmul.f32 %v302, %v329
    %v372 = vadd.f32 %v370, %v371
    %v373 = vmul.f32 %v296, 0.88622695
    %v374 = vmul.f32 %v373, %v285
    %v375 = vmul.f32 %v374, %v372
    %v376 = vmul.f32 %v285, 0.125
    %vm377 = vcmp.gt.f32.partialorder %v254, 1e-06
    %v378 = vsel %vm377, %v375, %v376
    %v379 = vsub.f32 %v378, %v283
    %v380 = vadd.f32 %v236, %v379
    %v381 = vmul.f32 %v240, 0.125
    %v382 = vadd.f32 %v238, %v381
    %s383 = scalar_lea.vmem [#allocation5], 8
    %v384 = vld [vmem:[%s383] sm:$0xf]
    %v385 = vld [vmem:[#allocation7 + $0x2] sm:$0x1]
    %v386 = vld [vmem:[#allocation8 + $0x2] sm:$0x1]
    %v387 = vld [vmem:[#allocation10 + $0x2] sm:$0x1]
    %v388 = vmul.f32 %v384, %v384
    %v390 = vrot.slane %v388, 1
    %v392 = vadd.f32 %v388, %v390
    %v393 = vrot.slane %v388, 2
    %v395 = vadd.f32 %v392, %v393
    %v396 = vrot.slane %v388, 3
    %v398 = vadd.f32 %v395, %v396
    %v399 = vmul.f32 %v382, %v382
    %v401 = vrot.slane %v399, 1
    %v403 = vadd.f32 %v399, %v401
    %v404 = vrot.slane %v399, 2
    %v406 = vadd.f32 %v403, %v404
    %v407 = vrot.slane %v399, 3
    %v409 = vadd.f32 %v406, %v407
    %v410 = vmul.f32 %v382, %v384
    %v412 = vrot.slane %v410, 1
    %v414 = vadd.f32 %v410, %v412
    %v415 = vrot.slane %v410, 2
    %v417 = vadd.f32 %v414, %v415
    %v418 = vrot.slane %v410, 3
    %v420 = vadd.f32 %v417, %v418
    %v421 = vsub.f32 %v95, %v409
    %v422 = vmul.f32 %v385, %v421
    %v423 = vmul.f32 %v420, 2.0
    %v424 = vmul.f32 %v423, %v386
    %v425 = vsub.f32 %v422, %v424
    %v426 = vmul.f32 %v398, %v387
    %v427 = vsub.f32 %v425, %v426
    %v428 = vmul.f32 %v421, 1.442695
    %v429 = vpow.pop %v428
    %v430 = vmax.f32 %v398, 1e-06
    %v431 = vrsqrt.pop %v430
    %v432 = vmul.f32 %v431, %v430
    %v433 = vmul.f32 %v432, %v431
    %v434 = vmul.f32 0.5, %v433
    %v435 = vsub.f32 1.5, %v434
    %v436 = vmul.f32 %v431, %v435
    %vm437 = vweird.f32 %v430
    %vm438 = vweird.f32 %v431
    %vm439 = vmor %vm437, %vm438
    %v440 = vsel %vm439, %v431, %v436
    %v441 = vmul.f32 %v430, %v440
    %v442 = vmul.f32 %v420, %v440
    %v443 = vmul.f32 %v441, 0.125
    %v444 = vadd.f32 %v443, %v442
    %vm445 = vcmp.ge.f32.partialorder %v442, 0.0
    %v446 = vsel %vm445, 1.0, -1.0
    %v447 = vand.u32 2147483647, %v442
    %v448 = vmul.f32 %v447, 0.3275911
    %v449 = vadd.f32 %v448, 1.0
    %v450 = vrcp.pop %v449
    %v451 = vmul.f32 %v449, %v450
    %v452 = vsub.f32 1.0, %v451
    %v453 = vmul.f32 %v450, %v452
    %v454 = vadd.f32 %v450, %v453
    %vm455 = vweird.f32 %v449
    %vm456 = vweird.f32 %v450
    %vm457 = vmor %vm455, %vm456
    %v458 = vsel %vm457, %v450, %v454
    %v459 = vand.u32 2147483647, %v449
    %vm460 = vcmp.eq.f32.partialorder %v459, 8.507059e+37
    %v461 = vand.u32 %v449, 2147483648
    %v462 = vor.u32 1.1754944e-38, %v461
    %v463 = vsel %vm460, %v462, %v458
    %v464 = vmul.f32 1.0, %v463
    %v465 = vmul.f32 %v464, 1.0614054
    %v466 = vadd.f32 %v465, -1.4531521
    %v467 = vmul.f32 %v464, %v466
    %v468 = vadd.f32 %v467, 1.4214138
    %v469 = vmul.f32 %v464, %v468
    %v470 = vadd.f32 %v469, -0.28449672
    %v471 = vmul.f32 %v464, %v470
    %v472 = vadd.f32 %v471, 0.2548296
    %v473 = vmul.f32 %v464, %v472
    %vm474 = vcmp.ge.f32.partialorder %v444, 0.0
    %v475 = vsel %vm474, 1.0, -1.0
    %v476 = vand.u32 2147483647, %v444
    %v477 = vmul.f32 %v476, 0.3275911
    %v478 = vadd.f32 %v477, 1.0
    %v479 = vrcp.pop %v478
    %v480 = vmul.f32 %v478, %v479
    %v481 = vsub.f32 1.0, %v480
    %v482 = vmul.f32 %v479, %v481
    %v483 = vadd.f32 %v479, %v482
    %vm484 = vweird.f32 %v478
    %vm485 = vweird.f32 %v479
    %vm486 = vmor %vm484, %vm485
    %v487 = vsel %vm486, %v479, %v483
    %v488 = vand.u32 2147483647, %v478
    %vm489 = vcmp.eq.f32.partialorder %v488, 8.507059e+37
    %v490 = vand.u32 %v478, 2147483648
    %v491 = vor.u32 1.1754944e-38, %v490
    %v492 = vsel %vm489, %v491, %v487
    %v493 = vmul.f32 1.0, %v492
    %v494 = vmul.f32 %v493, 1.0614054
    %v495 = vadd.f32 %v494, -1.4531521
    %v496 = vmul.f32 %v493, %v495
    %v497 = vadd.f32 %v496, 1.4214138
    %v498 = vmul.f32 %v493, %v497
    %v499 = vadd.f32 %v498, -0.28449672
    %v500 = vmul.f32 %v493, %v499
    %v501 = vadd.f32 %v500, 0.2548296
    %v502 = vmul.f32 %v493, %v501
    %v503 = vmul.f32 %v442, %v442
    %v504 = vmul.f32 %v503, 1.442695
    %v505 = vpow.pop %v504
    %v506 = vsub.f32 %v475, %v446
    %v507 = vmul.f32 %v506, %v505
    %v508 = vmul.f32 %v475, %v502
    %v509 = vmul.f32 %v444, %v444
    %v510 = vsub.f32 %v503, %v509
    %v511 = vmul.f32 %v510, 1.442695
    %v512 = vpow.pop %v511
    %v513 = vmul.f32 %v508, %v512
    %v514 = vsub.f32 %v507, %v513
    %v515 = vmul.f32 %v446, %v473
    %v516 = vadd.f32 %v514, %v515
    %v517 = vmul.f32 %v440, 0.88622695
    %v518 = vmul.f32 %v517, %v429
    %v519 = vmul.f32 %v518, %v516
    %v520 = vmul.f32 %v429, 0.125
    %vm521 = vcmp.gt.f32.partialorder %v398, 1e-06
    %v522 = vsel %vm521, %v519, %v520
    %v523 = vsub.f32 %v522, %v427
    %v524 = vadd.f32 %v380, %v523
    %v525 = vmul.f32 %v384, 0.125
    %v526 = vadd.f32 %v382, %v525
    %s527 = scalar_lea.vmem [#allocation5], 12
    %v528 = vld [vmem:[%s527] sm:$0xf]
    %v529 = vld [vmem:[#allocation7 + $0x3] sm:$0x1]
    %v530 = vld [vmem:[#allocation8 + $0x3] sm:$0x1]
    %v531 = vld [vmem:[#allocation10 + $0x3] sm:$0x1]
    %v532 = vmul.f32 %v528, %v528
    %v534 = vrot.slane %v532, 1
    %v536 = vadd.f32 %v532, %v534
    %v537 = vrot.slane %v532, 2
    %v539 = vadd.f32 %v536, %v537
    %v540 = vrot.slane %v532, 3
    %v542 = vadd.f32 %v539, %v540
    %v543 = vmul.f32 %v526, %v526
    %v545 = vrot.slane %v543, 1
    %v547 = vadd.f32 %v543, %v545
    %v548 = vrot.slane %v543, 2
    %v550 = vadd.f32 %v547, %v548
    %v551 = vrot.slane %v543, 3
    %v553 = vadd.f32 %v550, %v551
    %v554 = vmul.f32 %v526, %v528
    %v556 = vrot.slane %v554, 1
    %v558 = vadd.f32 %v554, %v556
    %v559 = vrot.slane %v554, 2
    %v561 = vadd.f32 %v558, %v559
    %v562 = vrot.slane %v554, 3
    %v564 = vadd.f32 %v561, %v562
    %v565 = vsub.f32 %v95, %v553
    %v566 = vmul.f32 %v529, %v565
    %v567 = vmul.f32 %v564, 2.0
    %v568 = vmul.f32 %v567, %v530
    %v569 = vsub.f32 %v566, %v568
    %v570 = vmul.f32 %v542, %v531
    %v571 = vsub.f32 %v569, %v570
    %v572 = vmul.f32 %v565, 1.442695
    %v573 = vpow.pop %v572
    %v574 = vmax.f32 %v542, 1e-06
    %v575 = vrsqrt.pop %v574
    %v576 = vmul.f32 %v575, %v574
    %v577 = vmul.f32 %v576, %v575
    %v578 = vmul.f32 0.5, %v577
    %v579 = vsub.f32 1.5, %v578
    %v580 = vmul.f32 %v575, %v579
    %vm581 = vweird.f32 %v574
    %vm582 = vweird.f32 %v575
    %vm583 = vmor %vm581, %vm582
    %v584 = vsel %vm583, %v575, %v580
    %v585 = vmul.f32 %v574, %v584
    %v586 = vmul.f32 %v564, %v584
    %v587 = vmul.f32 %v585, 0.125
    %v588 = vadd.f32 %v587, %v586
    %vm589 = vcmp.ge.f32.partialorder %v586, 0.0
    %v590 = vsel %vm589, 1.0, -1.0
    %v591 = vand.u32 2147483647, %v586
    %v592 = vmul.f32 %v591, 0.3275911
    %v593 = vadd.f32 %v592, 1.0
    %v594 = vrcp.pop %v593
    %v595 = vmul.f32 %v593, %v594
    %v596 = vsub.f32 1.0, %v595
    %v597 = vmul.f32 %v594, %v596
    %v598 = vadd.f32 %v594, %v597
    %vm599 = vweird.f32 %v593
    %vm600 = vweird.f32 %v594
    %vm601 = vmor %vm599, %vm600
    %v602 = vsel %vm601, %v594, %v598
    %v603 = vand.u32 2147483647, %v593
    %vm604 = vcmp.eq.f32.partialorder %v603, 8.507059e+37
    %v605 = vand.u32 %v593, 2147483648
    %v606 = vor.u32 1.1754944e-38, %v605
    %v607 = vsel %vm604, %v606, %v602
    %v608 = vmul.f32 1.0, %v607
    %v609 = vmul.f32 %v608, 1.0614054
    %v610 = vadd.f32 %v609, -1.4531521
    %v611 = vmul.f32 %v608, %v610
    %v612 = vadd.f32 %v611, 1.4214138
    %v613 = vmul.f32 %v608, %v612
    %v614 = vadd.f32 %v613, -0.28449672
    %v615 = vmul.f32 %v608, %v614
    %v616 = vadd.f32 %v615, 0.2548296
    %v617 = vmul.f32 %v608, %v616
    %vm618 = vcmp.ge.f32.partialorder %v588, 0.0
    %v619 = vsel %vm618, 1.0, -1.0
    %v620 = vand.u32 2147483647, %v588
    %v621 = vmul.f32 %v620, 0.3275911
    %v622 = vadd.f32 %v621, 1.0
    %v623 = vrcp.pop %v622
    %v624 = vmul.f32 %v622, %v623
    %v625 = vsub.f32 1.0, %v624
    %v626 = vmul.f32 %v623, %v625
    %v627 = vadd.f32 %v623, %v626
    %vm628 = vweird.f32 %v622
    %vm629 = vweird.f32 %v623
    %vm630 = vmor %vm628, %vm629
    %v631 = vsel %vm630, %v623, %v627
    %v632 = vand.u32 2147483647, %v622
    %vm633 = vcmp.eq.f32.partialorder %v632, 8.507059e+37
    %v634 = vand.u32 %v622, 2147483648
    %v635 = vor.u32 1.1754944e-38, %v634
    %v636 = vsel %vm633, %v635, %v631
    %v637 = vmul.f32 1.0, %v636
    %v638 = vmul.f32 %v637, 1.0614054
    %v639 = vadd.f32 %v638, -1.4531521
    %v640 = vmul.f32 %v637, %v639
    %v641 = vadd.f32 %v640, 1.4214138
    %v642 = vmul.f32 %v637, %v641
    %v643 = vadd.f32 %v642, -0.28449672
    %v644 = vmul.f32 %v637, %v643
    %v645 = vadd.f32 %v644, 0.2548296
    %v646 = vmul.f32 %v637, %v645
    %v647 = vmul.f32 %v586, %v586
    %v648 = vmul.f32 %v647, 1.442695
    %v649 = vpow.pop %v648
    %v650 = vsub.f32 %v619, %v590
    %v651 = vmul.f32 %v650, %v649
    %v652 = vmul.f32 %v619, %v646
    %v653 = vmul.f32 %v588, %v588
    %v654 = vsub.f32 %v647, %v653
    %v655 = vmul.f32 %v654, 1.442695
    %v656 = vpow.pop %v655
    %v657 = vmul.f32 %v652, %v656
    %v658 = vsub.f32 %v651, %v657
    %v659 = vmul.f32 %v590, %v617
    %v660 = vadd.f32 %v658, %v659
    %v661 = vmul.f32 %v584, 0.88622695
    %v662 = vmul.f32 %v661, %v573
    %v663 = vmul.f32 %v662, %v660
    %v664 = vmul.f32 %v573, 0.125
    %vm665 = vcmp.gt.f32.partialorder %v542, 1e-06
    %v666 = vsel %vm665, %v663, %v664
    %v667 = vsub.f32 %v666, %v571
    %v668 = vadd.f32 %v524, %v667
    %v669 = vmul.f32 %v528, 0.125
    %v670 = vadd.f32 %v526, %v669
    %s671 = scalar_lea.vmem [#allocation5], 16
    %v672 = vld [vmem:[%s671] sm:$0xf]
    %v673 = vld [vmem:[#allocation7 + $0x4] sm:$0x1]
    %v674 = vld [vmem:[#allocation8 + $0x4] sm:$0x1]
    %v675 = vld [vmem:[#allocation10 + $0x4] sm:$0x1]
    %v676 = vmul.f32 %v672, %v672
    %v678 = vrot.slane %v676, 1
    %v680 = vadd.f32 %v676, %v678
    %v681 = vrot.slane %v676, 2
    %v683 = vadd.f32 %v680, %v681
    %v684 = vrot.slane %v676, 3
    %v686 = vadd.f32 %v683, %v684
    %v687 = vmul.f32 %v670, %v670
    %v689 = vrot.slane %v687, 1
    %v691 = vadd.f32 %v687, %v689
    %v692 = vrot.slane %v687, 2
    %v694 = vadd.f32 %v691, %v692
    %v695 = vrot.slane %v687, 3
    %v697 = vadd.f32 %v694, %v695
    %v698 = vmul.f32 %v670, %v672
    %v700 = vrot.slane %v698, 1
    %v702 = vadd.f32 %v698, %v700
    %v703 = vrot.slane %v698, 2
    %v705 = vadd.f32 %v702, %v703
    %v706 = vrot.slane %v698, 3
    %v708 = vadd.f32 %v705, %v706
    %v709 = vsub.f32 %v95, %v697
    %v710 = vmul.f32 %v673, %v709
    %v711 = vmul.f32 %v708, 2.0
    %v712 = vmul.f32 %v711, %v674
    %v713 = vsub.f32 %v710, %v712
    %v714 = vmul.f32 %v686, %v675
    %v715 = vsub.f32 %v713, %v714
    %v716 = vmul.f32 %v709, 1.442695
    %v717 = vpow.pop %v716
    %v718 = vmax.f32 %v686, 1e-06
    %v719 = vrsqrt.pop %v718
    %v720 = vmul.f32 %v719, %v718
    %v721 = vmul.f32 %v720, %v719
    %v722 = vmul.f32 0.5, %v721
    %v723 = vsub.f32 1.5, %v722
    %v724 = vmul.f32 %v719, %v723
    %vm725 = vweird.f32 %v718
    %vm726 = vweird.f32 %v719
    %vm727 = vmor %vm725, %vm726
    %v728 = vsel %vm727, %v719, %v724
    %v729 = vmul.f32 %v718, %v728
    %v730 = vmul.f32 %v708, %v728
    %v731 = vmul.f32 %v729, 0.125
    %v732 = vadd.f32 %v731, %v730
    %vm733 = vcmp.ge.f32.partialorder %v730, 0.0
    %v734 = vsel %vm733, 1.0, -1.0
    %v735 = vand.u32 2147483647, %v730
    %v736 = vmul.f32 %v735, 0.3275911
    %v737 = vadd.f32 %v736, 1.0
    %v738 = vrcp.pop %v737
    %v739 = vmul.f32 %v737, %v738
    %v740 = vsub.f32 1.0, %v739
    %v741 = vmul.f32 %v738, %v740
    %v742 = vadd.f32 %v738, %v741
    %vm743 = vweird.f32 %v737
    %vm744 = vweird.f32 %v738
    %vm745 = vmor %vm743, %vm744
    %v746 = vsel %vm745, %v738, %v742
    %v747 = vand.u32 2147483647, %v737
    %vm748 = vcmp.eq.f32.partialorder %v747, 8.507059e+37
    %v749 = vand.u32 %v737, 2147483648
    %v750 = vor.u32 1.1754944e-38, %v749
    %v751 = vsel %vm748, %v750, %v746
    %v752 = vmul.f32 1.0, %v751
    %v753 = vmul.f32 %v752, 1.0614054
    %v754 = vadd.f32 %v753, -1.4531521
    %v755 = vmul.f32 %v752, %v754
    %v756 = vadd.f32 %v755, 1.4214138
    %v757 = vmul.f32 %v752, %v756
    %v758 = vadd.f32 %v757, -0.28449672
    %v759 = vmul.f32 %v752, %v758
    %v760 = vadd.f32 %v759, 0.2548296
    %v761 = vmul.f32 %v752, %v760
    %vm762 = vcmp.ge.f32.partialorder %v732, 0.0
    %v763 = vsel %vm762, 1.0, -1.0
    %v764 = vand.u32 2147483647, %v732
    %v765 = vmul.f32 %v764, 0.3275911
    %v766 = vadd.f32 %v765, 1.0
    %v767 = vrcp.pop %v766
    %v768 = vmul.f32 %v766, %v767
    %v769 = vsub.f32 1.0, %v768
    %v770 = vmul.f32 %v767, %v769
    %v771 = vadd.f32 %v767, %v770
    %vm772 = vweird.f32 %v766
    %vm773 = vweird.f32 %v767
    %vm774 = vmor %vm772, %vm773
    %v775 = vsel %vm774, %v767, %v771
    %v776 = vand.u32 2147483647, %v766
    %vm777 = vcmp.eq.f32.partialorder %v776, 8.507059e+37
    %v778 = vand.u32 %v766, 2147483648
    %v779 = vor.u32 1.1754944e-38, %v778
    %v780 = vsel %vm777, %v779, %v775
    %v781 = vmul.f32 1.0, %v780
    %v782 = vmul.f32 %v781, 1.0614054
    %v783 = vadd.f32 %v782, -1.4531521
    %v784 = vmul.f32 %v781, %v783
    %v785 = vadd.f32 %v784, 1.4214138
    %v786 = vmul.f32 %v781, %v785
    %v787 = vadd.f32 %v786, -0.28449672
    %v788 = vmul.f32 %v781, %v787
    %v789 = vadd.f32 %v788, 0.2548296
    %v790 = vmul.f32 %v781, %v789
    %v791 = vmul.f32 %v730, %v730
    %v792 = vmul.f32 %v791, 1.442695
    %v793 = vpow.pop %v792
    %v794 = vsub.f32 %v763, %v734
    %v795 = vmul.f32 %v794, %v793
    %v796 = vmul.f32 %v763, %v790
    %v797 = vmul.f32 %v732, %v732
    %v798 = vsub.f32 %v791, %v797
    %v799 = vmul.f32 %v798, 1.442695
    %v800 = vpow.pop %v799
    %v801 = vmul.f32 %v796, %v800
    %v802 = vsub.f32 %v795, %v801
    %v803 = vmul.f32 %v734, %v761
    %v804 = vadd.f32 %v802, %v803
    %v805 = vmul.f32 %v728, 0.88622695
    %v806 = vmul.f32 %v805, %v717
    %v807 = vmul.f32 %v806, %v804
    %v808 = vmul.f32 %v717, 0.125
    %vm809 = vcmp.gt.f32.partialorder %v686, 1e-06
    %v810 = vsel %vm809, %v807, %v808
    %v811 = vsub.f32 %v810, %v715
    %v812 = vadd.f32 %v668, %v811
    %v813 = vmul.f32 %v672, 0.125
    %v814 = vadd.f32 %v670, %v813
    %s815 = scalar_lea.vmem [#allocation5], 20
    %v816 = vld [vmem:[%s815] sm:$0xf]
    %v817 = vld [vmem:[#allocation7 + $0x5] sm:$0x1]
    %v818 = vld [vmem:[#allocation8 + $0x5] sm:$0x1]
    %v819 = vld [vmem:[#allocation10 + $0x5] sm:$0x1]
    %v820 = vmul.f32 %v816, %v816
    %v822 = vrot.slane %v820, 1
    %v824 = vadd.f32 %v820, %v822
    %v825 = vrot.slane %v820, 2
    %v827 = vadd.f32 %v824, %v825
    %v828 = vrot.slane %v820, 3
    %v830 = vadd.f32 %v827, %v828
    %v831 = vmul.f32 %v814, %v814
    %v833 = vrot.slane %v831, 1
    %v835 = vadd.f32 %v831, %v833
    %v836 = vrot.slane %v831, 2
    %v838 = vadd.f32 %v835, %v836
    %v839 = vrot.slane %v831, 3
    %v841 = vadd.f32 %v838, %v839
    %v842 = vmul.f32 %v814, %v816
    %v844 = vrot.slane %v842, 1
    %v846 = vadd.f32 %v842, %v844
    %v847 = vrot.slane %v842, 2
    %v849 = vadd.f32 %v846, %v847
    %v850 = vrot.slane %v842, 3
    %v852 = vadd.f32 %v849, %v850
    %v853 = vsub.f32 %v95, %v841
    %v854 = vmul.f32 %v817, %v853
    %v855 = vmul.f32 %v852, 2.0
    %v856 = vmul.f32 %v855, %v818
    %v857 = vsub.f32 %v854, %v856
    %v858 = vmul.f32 %v830, %v819
    %v859 = vsub.f32 %v857, %v858
    %v860 = vmul.f32 %v853, 1.442695
    %v861 = vpow.pop %v860
    %v862 = vmax.f32 %v830, 1e-06
    %v863 = vrsqrt.pop %v862
    %v864 = vmul.f32 %v863, %v862
    %v865 = vmul.f32 %v864, %v863
    %v866 = vmul.f32 0.5, %v865
    %v867 = vsub.f32 1.5, %v866
    %v868 = vmul.f32 %v863, %v867
    %vm869 = vweird.f32 %v862
    %vm870 = vweird.f32 %v863
    %vm871 = vmor %vm869, %vm870
    %v872 = vsel %vm871, %v863, %v868
    %v873 = vmul.f32 %v862, %v872
    %v874 = vmul.f32 %v852, %v872
    %v875 = vmul.f32 %v873, 0.125
    %v876 = vadd.f32 %v875, %v874
    %vm877 = vcmp.ge.f32.partialorder %v874, 0.0
    %v878 = vsel %vm877, 1.0, -1.0
    %v879 = vand.u32 2147483647, %v874
    %v880 = vmul.f32 %v879, 0.3275911
    %v881 = vadd.f32 %v880, 1.0
    %v882 = vrcp.pop %v881
    %v883 = vmul.f32 %v881, %v882
    %v884 = vsub.f32 1.0, %v883
    %v885 = vmul.f32 %v882, %v884
    %v886 = vadd.f32 %v882, %v885
    %vm887 = vweird.f32 %v881
    %vm888 = vweird.f32 %v882
    %vm889 = vmor %vm887, %vm888
    %v890 = vsel %vm889, %v882, %v886
    %v891 = vand.u32 2147483647, %v881
    %vm892 = vcmp.eq.f32.partialorder %v891, 8.507059e+37
    %v893 = vand.u32 %v881, 2147483648
    %v894 = vor.u32 1.1754944e-38, %v893
    %v895 = vsel %vm892, %v894, %v890
    %v896 = vmul.f32 1.0, %v895
    %v897 = vmul.f32 %v896, 1.0614054
    %v898 = vadd.f32 %v897, -1.4531521
    %v899 = vmul.f32 %v896, %v898
    %v900 = vadd.f32 %v899, 1.4214138
    %v901 = vmul.f32 %v896, %v900
    %v902 = vadd.f32 %v901, -0.28449672
    %v903 = vmul.f32 %v896, %v902
    %v904 = vadd.f32 %v903, 0.2548296
    %v905 = vmul.f32 %v896, %v904
    %vm906 = vcmp.ge.f32.partialorder %v876, 0.0
    %v907 = vsel %vm906, 1.0, -1.0
    %v908 = vand.u32 2147483647, %v876
    %v909 = vmul.f32 %v908, 0.3275911
    %v910 = vadd.f32 %v909, 1.0
    %v911 = vrcp.pop %v910
    %v912 = vmul.f32 %v910, %v911
    %v913 = vsub.f32 1.0, %v912
    %v914 = vmul.f32 %v911, %v913
    %v915 = vadd.f32 %v911, %v914
    %vm916 = vweird.f32 %v910
    %vm917 = vweird.f32 %v911
    %vm918 = vmor %vm916, %vm917
    %v919 = vsel %vm918, %v911, %v915
    %v920 = vand.u32 2147483647, %v910
    %vm921 = vcmp.eq.f32.partialorder %v920, 8.507059e+37
    %v922 = vand.u32 %v910, 2147483648
    %v923 = vor.u32 1.1754944e-38, %v922
    %v924 = vsel %vm921, %v923, %v919
    %v925 = vmul.f32 1.0, %v924
    %v926 = vmul.f32 %v925, 1.0614054
    %v927 = vadd.f32 %v926, -1.4531521
    %v928 = vmul.f32 %v925, %v927
    %v929 = vadd.f32 %v928, 1.4214138
    %v930 = vmul.f32 %v925, %v929
    %v931 = vadd.f32 %v930, -0.28449672
    %v932 = vmul.f32 %v925, %v931
    %v933 = vadd.f32 %v932, 0.2548296
    %v934 = vmul.f32 %v925, %v933
    %v935 = vmul.f32 %v874, %v874
    %v936 = vmul.f32 %v935, 1.442695
    %v937 = vpow.pop %v936
    %v938 = vsub.f32 %v907, %v878
    %v939 = vmul.f32 %v938, %v937
    %v940 = vmul.f32 %v907, %v934
    %v941 = vmul.f32 %v876, %v876
    %v942 = vsub.f32 %v935, %v941
    %v943 = vmul.f32 %v942, 1.442695
    %v944 = vpow.pop %v943
    %v945 = vmul.f32 %v940, %v944
    %v946 = vsub.f32 %v939, %v945
    %v947 = vmul.f32 %v878, %v905
    %v948 = vadd.f32 %v946, %v947
    %v949 = vmul.f32 %v872, 0.88622695
    %v950 = vmul.f32 %v949, %v861
    %v951 = vmul.f32 %v950, %v948
    %v952 = vmul.f32 %v861, 0.125
    %vm953 = vcmp.gt.f32.partialorder %v830, 1e-06
    %v954 = vsel %vm953, %v951, %v952
    %v955 = vsub.f32 %v954, %v859
    %v956 = vadd.f32 %v812, %v955
    %v957 = vmul.f32 %v816, 0.125
    %v958 = vadd.f32 %v814, %v957
    %s959 = scalar_lea.vmem [#allocation5], 24
    %v960 = vld [vmem:[%s959] sm:$0xf]
    %v961 = vld [vmem:[#allocation7 + $0x6] sm:$0x1]
    %v962 = vld [vmem:[#allocation8 + $0x6] sm:$0x1]
    %v963 = vld [vmem:[#allocation10 + $0x6] sm:$0x1]
    %v964 = vmul.f32 %v960, %v960
    %v966 = vrot.slane %v964, 1
    %v968 = vadd.f32 %v964, %v966
    %v969 = vrot.slane %v964, 2
    %v971 = vadd.f32 %v968, %v969
    %v972 = vrot.slane %v964, 3
    %v974 = vadd.f32 %v971, %v972
    %v975 = vmul.f32 %v958, %v958
    %v977 = vrot.slane %v975, 1
    %v979 = vadd.f32 %v975, %v977
    %v980 = vrot.slane %v975, 2
    %v982 = vadd.f32 %v979, %v980
    %v983 = vrot.slane %v975, 3
    %v985 = vadd.f32 %v982, %v983
    %v986 = vmul.f32 %v958, %v960
    %v988 = vrot.slane %v986, 1
    %v990 = vadd.f32 %v986, %v988
    %v991 = vrot.slane %v986, 2
    %v993 = vadd.f32 %v990, %v991
    %v994 = vrot.slane %v986, 3
    %v996 = vadd.f32 %v993, %v994
    %v997 = vsub.f32 %v95, %v985
    %v998 = vmul.f32 %v961, %v997
    %v999 = vmul.f32 %v996, 2.0
    %v1000 = vmul.f32 %v999, %v962
    %v1001 = vsub.f32 %v998, %v1000
    %v1002 = vmul.f32 %v974, %v963
    %v1003 = vsub.f32 %v1001, %v1002
    %v1004 = vmul.f32 %v997, 1.442695
    %v1005 = vpow.pop %v1004
    %v1006 = vmax.f32 %v974, 1e-06
    %v1007 = vrsqrt.pop %v1006
    %v1008 = vmul.f32 %v1007, %v1006
    %v1009 = vmul.f32 %v1008, %v1007
    %v1010 = vmul.f32 0.5, %v1009
    %v1011 = vsub.f32 1.5, %v1010
    %v1012 = vmul.f32 %v1007, %v1011
    %vm1013 = vweird.f32 %v1006
    %vm1014 = vweird.f32 %v1007
    %vm1015 = vmor %vm1013, %vm1014
    %v1016 = vsel %vm1015, %v1007, %v1012
    %v1017 = vmul.f32 %v1006, %v1016
    %v1018 = vmul.f32 %v996, %v1016
    %v1019 = vmul.f32 %v1017, 0.125
    %v1020 = vadd.f32 %v1019, %v1018
    %vm1021 = vcmp.ge.f32.partialorder %v1018, 0.0
    %v1022 = vsel %vm1021, 1.0, -1.0
    %v1023 = vand.u32 2147483647, %v1018
    %v1024 = vmul.f32 %v1023, 0.3275911
    %v1025 = vadd.f32 %v1024, 1.0
    %v1026 = vrcp.pop %v1025
    %v1027 = vmul.f32 %v1025, %v1026
    %v1028 = vsub.f32 1.0, %v1027
    %v1029 = vmul.f32 %v1026, %v1028
    %v1030 = vadd.f32 %v1026, %v1029
    %vm1031 = vweird.f32 %v1025
    %vm1032 = vweird.f32 %v1026
    %vm1033 = vmor %vm1031, %vm1032
    %v1034 = vsel %vm1033, %v1026, %v1030
    %v1035 = vand.u32 2147483647, %v1025
    %vm1036 = vcmp.eq.f32.partialorder %v1035, 8.507059e+37
    %v1037 = vand.u32 %v1025, 2147483648
    %v1038 = vor.u32 1.1754944e-38, %v1037
    %v1039 = vsel %vm1036, %v1038, %v1034
    %v1040 = vmul.f32 1.0, %v1039
    %v1041 = vmul.f32 %v1040, 1.0614054
    %v1042 = vadd.f32 %v1041, -1.4531521
    %v1043 = vmul.f32 %v1040, %v1042
    %v1044 = vadd.f32 %v1043, 1.4214138
    %v1045 = vmul.f32 %v1040, %v1044
    %v1046 = vadd.f32 %v1045, -0.28449672
    %v1047 = vmul.f32 %v1040, %v1046
    %v1048 = vadd.f32 %v1047, 0.2548296
    %v1049 = vmul.f32 %v1040, %v1048
    %vm1050 = vcmp.ge.f32.partialorder %v1020, 0.0
    %v1051 = vsel %vm1050, 1.0, -1.0
    %v1052 = vand.u32 2147483647, %v1020
    %v1053 = vmul.f32 %v1052, 0.3275911
    %v1054 = vadd.f32 %v1053, 1.0
    %v1055 = vrcp.pop %v1054
    %v1056 = vmul.f32 %v1054, %v1055
    %v1057 = vsub.f32 1.0, %v1056
    %v1058 = vmul.f32 %v1055, %v1057
    %v1059 = vadd.f32 %v1055, %v1058
    %vm1060 = vweird.f32 %v1054
    %vm1061 = vweird.f32 %v1055
    %vm1062 = vmor %vm1060, %vm1061
    %v1063 = vsel %vm1062, %v1055, %v1059
    %v1064 = vand.u32 2147483647, %v1054
    %vm1065 = vcmp.eq.f32.partialorder %v1064, 8.507059e+37
    %v1066 = vand.u32 %v1054, 2147483648
    %v1067 = vor.u32 1.1754944e-38, %v1066
    %v1068 = vsel %vm1065, %v1067, %v1063
    %v1069 = vmul.f32 1.0, %v1068
    %v1070 = vmul.f32 %v1069, 1.0614054
    %v1071 = vadd.f32 %v1070, -1.4531521
    %v1072 = vmul.f32 %v1069, %v1071
    %v1073 = vadd.f32 %v1072, 1.4214138
    %v1074 = vmul.f32 %v1069, %v1073
    %v1075 = vadd.f32 %v1074, -0.28449672
    %v1076 = vmul.f32 %v1069, %v1075
    %v1077 = vadd.f32 %v1076, 0.2548296
    %v1078 = vmul.f32 %v1069, %v1077
    %v1079 = vmul.f32 %v1018, %v1018
    %v1080 = vmul.f32 %v1079, 1.442695
    %v1081 = vpow.pop %v1080
    %v1082 = vsub.f32 %v1051, %v1022
    %v1083 = vmul.f32 %v1082, %v1081
    %v1084 = vmul.f32 %v1051, %v1078
    %v1085 = vmul.f32 %v1020, %v1020
    %v1086 = vsub.f32 %v1079, %v1085
    %v1087 = vmul.f32 %v1086, 1.442695
    %v1088 = vpow.pop %v1087
    %v1089 = vmul.f32 %v1084, %v1088
    %v1090 = vsub.f32 %v1083, %v1089
    %v1091 = vmul.f32 %v1022, %v1049
    %v1092 = vadd.f32 %v1090, %v1091
    %v1093 = vmul.f32 %v1016, 0.88622695
    %v1094 = vmul.f32 %v1093, %v1005
    %v1095 = vmul.f32 %v1094, %v1092
    %v1096 = vmul.f32 %v1005, 0.125
    %vm1097 = vcmp.gt.f32.partialorder %v974, 1e-06
    %v1098 = vsel %vm1097, %v1095, %v1096
    %v1099 = vsub.f32 %v1098, %v1003
    %v1100 = vadd.f32 %v956, %v1099
    %v1101 = vmul.f32 %v960, 0.125
    %v1102 = vadd.f32 %v958, %v1101
    %s1103 = scalar_lea.vmem [#allocation5], 28
    %v1104 = vld [vmem:[%s1103] sm:$0xf]
    %v1105 = vld [vmem:[#allocation7 + $0x7] sm:$0x1]
    %v1106 = vld [vmem:[#allocation8 + $0x7] sm:$0x1]
    %v1107 = vld [vmem:[#allocation10 + $0x7] sm:$0x1]
    %v1108 = vmul.f32 %v1104, %v1104
    %v1110 = vrot.slane %v1108, 1
    %v1112 = vadd.f32 %v1108, %v1110
    %v1113 = vrot.slane %v1108, 2
    %v1115 = vadd.f32 %v1112, %v1113
    %v1116 = vrot.slane %v1108, 3
    %v1118 = vadd.f32 %v1115, %v1116
    %v1119 = vmul.f32 %v1102, %v1102
    %v1121 = vrot.slane %v1119, 1
    %v1123 = vadd.f32 %v1119, %v1121
    %v1124 = vrot.slane %v1119, 2
    %v1126 = vadd.f32 %v1123, %v1124
    %v1127 = vrot.slane %v1119, 3
    %v1129 = vadd.f32 %v1126, %v1127
    %v1130 = vmul.f32 %v1102, %v1104
    %v1132 = vrot.slane %v1130, 1
    %v1134 = vadd.f32 %v1130, %v1132
    %v1135 = vrot.slane %v1130, 2
    %v1137 = vadd.f32 %v1134, %v1135
    %v1138 = vrot.slane %v1130, 3
    %v1140 = vadd.f32 %v1137, %v1138
    %v1141 = vsub.f32 %v95, %v1129
    %v1142 = vmul.f32 %v1105, %v1141
    %v1143 = vmul.f32 %v1140, 2.0
    %v1144 = vmul.f32 %v1143, %v1106
    %v1145 = vsub.f32 %v1142, %v1144
    %v1146 = vmul.f32 %v1118, %v1107
    %v1147 = vsub.f32 %v1145, %v1146
    %v1148 = vmul.f32 %v1141, 1.442695
    %v1149 = vpow.pop %v1148
    %v1150 = vmax.f32 %v1118, 1e-06
    %v1151 = vrsqrt.pop %v1150
    %v1152 = vmul.f32 %v1151, %v1150
    %v1153 = vmul.f32 %v1152, %v1151
    %v1154 = vmul.f32 0.5, %v1153
    %v1155 = vsub.f32 1.5, %v1154
    %v1156 = vmul.f32 %v1151, %v1155
    %vm1157 = vweird.f32 %v1150
    %vm1158 = vweird.f32 %v1151
    %vm1159 = vmor %vm1157, %vm1158
    %v1160 = vsel %vm1159, %v1151, %v1156
    %v1161 = vmul.f32 %v1150, %v1160
    %v1162 = vmul.f32 %v1140, %v1160
    %v1163 = vmul.f32 %v1161, 0.125
    %v1164 = vadd.f32 %v1163, %v1162
    %vm1165 = vcmp.ge.f32.partialorder %v1162, 0.0
    %v1166 = vsel %vm1165, 1.0, -1.0
    %v1167 = vand.u32 2147483647, %v1162
    %v1168 = vmul.f32 %v1167, 0.3275911
    %v1169 = vadd.f32 %v1168, 1.0
    %v1170 = vrcp.pop %v1169
    %v1171 = vmul.f32 %v1169, %v1170
    %v1172 = vsub.f32 1.0, %v1171
    %v1173 = vmul.f32 %v1170, %v1172
    %v1174 = vadd.f32 %v1170, %v1173
    %vm1175 = vweird.f32 %v1169
    %vm1176 = vweird.f32 %v1170
    %vm1177 = vmor %vm1175, %vm1176
    %v1178 = vsel %vm1177, %v1170, %v1174
    %v1179 = vand.u32 2147483647, %v1169
    %vm1180 = vcmp.eq.f32.partialorder %v1179, 8.507059e+37
    %v1181 = vand.u32 %v1169, 2147483648
    %v1182 = vor.u32 1.1754944e-38, %v1181
    %v1183 = vsel %vm1180, %v1182, %v1178
    %v1184 = vmul.f32 1.0, %v1183
    %v1185 = vmul.f32 %v1184, 1.0614054
    %v1186 = vadd.f32 %v1185, -1.4531521
    %v1187 = vmul.f32 %v1184, %v1186
    %v1188 = vadd.f32 %v1187, 1.4214138
    %v1189 = vmul.f32 %v1184, %v1188
    %v1190 = vadd.f32 %v1189, -0.28449672
    %v1191 = vmul.f32 %v1184, %v1190
    %v1192 = vadd.f32 %v1191, 0.2548296
    %v1193 = vmul.f32 %v1184, %v1192
    %vm1194 = vcmp.ge.f32.partialorder %v1164, 0.0
    %v1195 = vsel %vm1194, 1.0, -1.0
    %v1196 = vand.u32 2147483647, %v1164
    %v1197 = vmul.f32 %v1196, 0.3275911
    %v1198 = vadd.f32 %v1197, 1.0
    %v1199 = vrcp.pop %v1198
    %v1200 = vmul.f32 %v1198, %v1199
    %v1201 = vsub.f32 1.0, %v1200
    %v1202 = vmul.f32 %v1199, %v1201
    %v1203 = vadd.f32 %v1199, %v1202
    %vm1204 = vweird.f32 %v1198
    %vm1205 = vweird.f32 %v1199
    %vm1206 = vmor %vm1204, %vm1205
    %v1207 = vsel %vm1206, %v1199, %v1203
    %v1208 = vand.u32 2147483647, %v1198
    %vm1209 = vcmp.eq.f32.partialorder %v1208, 8.507059e+37
    %v1210 = vand.u32 %v1198, 2147483648
    %v1211 = vor.u32 1.1754944e-38, %v1210
    %v1212 = vsel %vm1209, %v1211, %v1207
    %v1213 = vmul.f32 1.0, %v1212
    %v1214 = vmul.f32 %v1213, 1.0614054
    %v1215 = vadd.f32 %v1214, -1.4531521
    %v1216 = vmul.f32 %v1213, %v1215
    %v1217 = vadd.f32 %v1216, 1.4214138
    %v1218 = vmul.f32 %v1213, %v1217
    %v1219 = vadd.f32 %v1218, -0.28449672
    %v1220 = vmul.f32 %v1213, %v1219
    %v1221 = vadd.f32 %v1220, 0.2548296
    %v1222 = vmul.f32 %v1213, %v1221
    %v1223 = vmul.f32 %v1162, %v1162
    %v1224 = vmul.f32 %v1223, 1.442695
    %v1225 = vpow.pop %v1224
    %v1226 = vsub.f32 %v1195, %v1166
    %v1227 = vmul.f32 %v1226, %v1225
    %v1228 = vmul.f32 %v1195, %v1222
    %v1229 = vmul.f32 %v1164, %v1164
    %v1230 = vsub.f32 %v1223, %v1229
    %v1231 = vmul.f32 %v1230, 1.442695
    %v1232 = vpow.pop %v1231
    %v1233 = vmul.f32 %v1228, %v1232
    %v1234 = vsub.f32 %v1227, %v1233
    %v1235 = vmul.f32 %v1166, %v1193
    %v1236 = vadd.f32 %v1234, %v1235
    %v1237 = vmul.f32 %v1160, 0.88622695
    %v1238 = vmul.f32 %v1237, %v1149
    %v1239 = vmul.f32 %v1238, %v1236
    %v1240 = vmul.f32 %v1149, 0.125
    %vm1241 = vcmp.gt.f32.partialorder %v1118, 1e-06
    %v1242 = vsel %vm1241, %v1239, %v1240
    %v1243 = vsub.f32 %v1242, %v1147
    %v1244 = vadd.f32 %v1100, %v1243
    %1245 = vst [vmem:[#allocation11] sm:$0x1] %v1244
    // Predicated region
    $region46: #{tpu_custom_call.1} parent=1 // pred_check
      _
    $region47: #{tpu_custom_call.1} parent=1 // pred_check_branch
      %1247 = sbr.rel (0) target = $region49
    $region48: #{tpu_custom_call.1} parent=1 // pred_region
      %1249 = vsyncadd [#allocation4], 0
      %s1251 = sshll.u32 [#allocation11], 4
      %s1252 = int_to_ptr.vmem [resolvable:$true] %s1251
      %s1253 = sshll.u32 %s6, 4
      %s1254 = int_to_ptr.hbm [resolvable:$true] %s1253
      %1256 = dma.vmem_to_hbm [thread:$0]  %s1252, 16, %s1254, [#allocation4]
    $region49: #{tpu_custom_call.1} parent=1 // pred_fallthru
      _
    // Predicated region
    $region50: #{tpu_custom_call.1} parent=1 // pred_check
      _
    $region51: #{tpu_custom_call.1} parent=1 // pred_check_branch
      %1258 = sbr.rel (0) target = $region53
    $region52: #{tpu_custom_call.1} parent=1 // pred_region
      %1260 = dma.done [#allocation4], 16
    $region53: #{tpu_custom_call.1} parent=1 // pred_fallthru
      _
    %1261 = vsyncpa [#allocation3], 1
    %1262 = vsyncpa [#allocation6], 1
    %1263 = vsyncpa [#allocation9], 1
    %1264 = vsyncpa [#allocation4], 1

</llo_original>
